<compile_context>
chip_gen: v6e
topology: v6e:2x2x1
jax: 0.10.0
libtpu: 0.0.40
codegen_flags: <defaults>
</compile_context>

<pallas_src>
import functools

import jax
import jax.numpy as jnp
from jax import lax
from jax.experimental import pallas as pl
from jax.experimental.pallas import tpu as pltpu


def _cosface_tile_kernel(fr_ref, ftc_ref, labc_ref, labr_ref, out_ref,
                         m_pos, l_pos, m_neg, l_neg,
                         *, s, m, n_valid, block_n):
    """One (tm x tn) tile of the pairwise loss with online logsumexp."""
    j = pl.program_id(1)
    fill = jnp.float32(-10.0 * s)          # same filler value as the reference

    @pl.when(j == 0)
    def _init():
        m_pos[...] = jnp.full_like(m_pos, fill)
        m_neg[...] = jnp.full_like(m_neg, fill)
        l_pos[...] = jnp.zeros_like(l_pos)
        l_neg[...] = jnp.zeros_like(l_neg)

    # (tm, tn) tile of s * cosine_similarity.  The column operand is already
    # transposed and carries the s scale -> single MXU matmul, f32 accumulate.
    sim_s = jnp.dot(fr_ref[...], ftc_ref[...],
                    preferred_element_type=jnp.float32)

    labc = labc_ref[...]                               # (tm, 1) int32
    labr = labr_ref[...]                               # (1, tn) int32
    same = labc == labr                                # (tm, tn) bool
    col = j * block_n + lax.broadcasted_iota(jnp.int32, (1, block_n), 1)
    valid = col < n_valid                              # (1, tn) bool (padding)
    is_pos = jnp.logical_and(same, valid)
    is_neg = jnp.logical_and(jnp.logical_not(same), valid)

    sm = jnp.float32(s * m)
    pos_arg = jnp.where(is_pos, sm - sim_s, fill)      # == s * s_pos of the ref
    neg_arg = jnp.where(is_neg, sim_s, fill)           # == s * s_neg of the ref

    mp_old = m_pos[...]
    mn_old = m_neg[...]
    mp_new = jnp.maximum(mp_old, jnp.max(pos_arg, axis=-1, keepdims=True))
    mn_new = jnp.maximum(mn_old, jnp.max(neg_arg, axis=-1, keepdims=True))

    # Single exp per element: route each entry to its own running max.
    e = jnp.exp(jnp.where(is_pos, pos_arg - mp_new, neg_arg - mn_new))
    l_pos[...] = (l_pos[...] * jnp.exp(mp_old - mp_new)
                  + jnp.sum(jnp.where(is_pos, e, 0.0), axis=-1, keepdims=True))
    l_neg[...] = (l_neg[...] * jnp.exp(mn_old - mn_new)
                  + jnp.sum(jnp.where(is_neg, e, 0.0), axis=-1, keepdims=True))
    m_pos[...] = mp_new
    m_neg[...] = mn_new

    @pl.when(j == pl.num_programs(1) - 1)
    def _finalize():
        # logit_p + logit_n, then a numerically stable softplus.
        z = (m_pos[...] + jnp.log(l_pos[...])) + (m_neg[...] + jnp.log(l_neg[...]))
        sp = jnp.maximum(z, 0.0) + jnp.log1p(jnp.exp(-jnp.abs(z)))
        out_ref[...] = jnp.broadcast_to(sp, out_ref.shape)   # lane-dense store


def _round_up(x, mult):
    return (x + mult - 1) // mult * mult


def cosface_pairwise_loss(feat, label, s=30.0, m=0.3, *,
                          block_m=256, block_n=512,
                          mxu_dtype=jnp.float32):
    """feat: (N, D) float, label: (N,) int.  Returns (loss, 0, 0) like torch."""
    N, D = feat.shape

    # ---- wrapper-side prep: normalize, fold in s, transpose, pad (O(N*D)) ----
    f = feat.astype(jnp.float32)
    inv_norm = lax.rsqrt(
        jnp.maximum(jnp.sum(f * f, axis=-1, keepdims=True), jnp.float32(1e-16)))
    fn = f * inv_norm                                   # eps=1e-8 like torch

    dp = _round_up(D, 128)                              # pad D for the MXU/lanes
    bn = min(block_n, _round_up(N, 128))                # lane tile (mult of 128)
    np_ = _round_up(N, bn)                              # padded batch
    bm = block_m if np_ % block_m == 0 else 128         # sublane tile

    fn = jnp.pad(fn, ((0, np_ - N), (0, dp - D)))       # zero rows are harmless
    f_rows = fn.astype(mxu_dtype)                       # (Np, Dp)
    f_cols = (fn * jnp.float32(s)).astype(mxu_dtype).T  # (Dp, Np), carries s

    lab = jnp.pad(label.astype(jnp.int32), (0, np_ - N),
                  constant_values=jnp.iinfo(jnp.int32).min)
    lab_col = lab.reshape(np_, 1)
    lab_row = lab.reshape(1, np_)

    grid = (np_ // bm, np_ // bn)
    kernel = functools.partial(_cosface_tile_kernel,
                               s=float(s), m=float(m), n_valid=N, block_n=bn)

    per_row = pl.pallas_call(
        kernel,
        out_shape=jax.ShapeDtypeStruct((np_, 128), jnp.float32),
        grid=grid,
        in_specs=[
            pl.BlockSpec((bm, dp), lambda i, j: (i, 0)),   # row tile of fn
            pl.BlockSpec((dp, bn), lambda i, j: (0, j)),   # col tile of (s*fn)^T
            pl.BlockSpec((bm, 1), lambda i, j: (i, 0)),    # labels, column view
            pl.BlockSpec((1, bn), lambda i, j: (0, j)),    # labels, row view
        ],
        out_specs=pl.BlockSpec((bm, 128), lambda i, j: (i, 0)),
        scratch_shapes=[pltpu.VMEM((bm, 1), jnp.float32)] * 4,
        compiler_params=pltpu.CompilerParams(
            dimension_semantics=("parallel", "arbitrary"),
            vmem_limit_bytes=32 * 1024 * 1024),
    )(f_rows, f_cols, lab_col, lab_row)

    loss = jnp.sum(per_row[:N, 0]) / jnp.float32(N)
    return loss, 0, 0


def _reference(feat, label, s=30.0, m=0.3):
    # Pure-JAX reference mirroring the PyTorch module.
    fn = feat / jnp.maximum(jnp.linalg.norm(feat, axis=-1, keepdims=True), 1e-8)
    sim = fn @ fn.T
    mask = (label[:, None] == label[None, :]).astype(jnp.float32)
    nmask = 1.0 - mask
    sim = sim - mask * m
    s_pos = -sim * mask - 10.0 * nmask
    s_neg = sim * nmask - 10.0 * mask
    lp = jax.scipy.special.logsumexp(s_pos * s, axis=-1)
    ln = jax.scipy.special.logsumexp(s_neg * s, axis=-1)
    return jnp.mean(jax.nn.softplus(lp + ln))


if __name__ == "__main__":
    key = jax.random.PRNGKey(0)
    k1, k2, k3, k4 = jax.random.split(key, 4)

    # Small shape from the module spec: feat (N, D), label (N,).
    N, D = 8, 32
    feat = jax.random.normal(k1, (N, D), dtype=jnp.float32)
    label = jax.random.randint(k2, (N,), 0, 3, dtype=jnp.int32)
    loss, _, _ = cosface_pairwise_loss(feat, label, s=30.0, m=0.3)
    loss = jax.block_until_ready(loss)
    ref = _reference(feat, label, s=30.0, m=0.3)
    assert jnp.allclose(loss, ref, rtol=2e-4, atol=2e-4), (loss, ref)

    # Non-aligned shape exercising padding + multiple row/column tiles.
    N2, D2 = 200, 48
    feat2 = jax.random.normal(k3, (N2, D2), dtype=jnp.float32)
    label2 = jax.random.randint(k4, (N2,), 0, 7, dtype=jnp.int32)
    loss2, _, _ = cosface_pairwise_loss(feat2, label2, s=30.0, m=0.3,
                                        block_m=128, block_n=128)
    loss2 = jax.block_until_ready(loss2)
    ref2 = _reference(feat2, label2, s=30.0, m=0.3)
    assert jnp.allclose(loss2, ref2, rtol=2e-4, atol=2e-4), (loss2, ref2)

    # Degenerate case: every pair positive (negative accumulator stays zero).
    feat3 = jax.random.normal(k3, (16, 32), dtype=jnp.float32)
    label3 = jnp.zeros((16,), dtype=jnp.int32)
    loss3, _, _ = cosface_pairwise_loss(feat3, label3)
    loss3 = jax.block_until_ready(loss3)
    ref3 = _reference(feat3, label3)
    assert jnp.allclose(loss3, ref3, rtol=2e-4, atol=2e-4), (loss3, ref3)

    print("KERNEL_OK")
</pallas_src>

<mosaic_0001>
module attributes {stable_mosaic.version = 11 : i64} {
  func.func @_cosface_tile_kernel(%arg0: i32, %arg1: i32, %arg2: memref<128x128xf32, #tpu.memory_space<vmem>>, %arg3: memref<128x128xf32, #tpu.memory_space<vmem>>, %arg4: memref<128x1xi32, #tpu.memory_space<vmem>>, %arg5: memref<1x128xi32, #tpu.memory_space<vmem>>, %arg6: memref<128x128xf32, #tpu.memory_space<vmem>>, %arg7: memref<128x1xf32, #tpu.memory_space<vmem>>, %arg8: memref<128x1xf32, #tpu.memory_space<vmem>>, %arg9: memref<128x1xf32, #tpu.memory_space<vmem>>, %arg10: memref<128x1xf32, #tpu.memory_space<vmem>>) attributes {dimension_semantics = [#tpu.dimension_semantics<parallel>, #tpu.dimension_semantics<arbitrary>], iteration_bounds = array<i64: 1, 1>, scalar_prefetch = 0 : i64, scratch_operands = 4 : i64, tpu.core_type = #tpu.core_type<tc>, window_params = [{transform_indices = @transform_0, window_bounds = array<i64: 128, 128>}, {transform_indices = @transform_1, window_bounds = array<i64: 128, 128>}, {transform_indices = @transform_2, window_bounds = array<i64: 128, 1>}, {transform_indices = @transform_3, window_bounds = array<i64: 1, 128>}, {transform_indices = @transform_4, window_bounds = array<i64: 128, 128>}]} {
    %c0_i32 = arith.constant 0 : i32
    %0 = arith.cmpi eq, %arg1, %c0_i32 : i32
    %1 = arith.extui %0 : i1 to i32
    %cst = arith.constant -3.000000e+02 : f32
    %c0_i32_0 = arith.constant 0 : i32
    %2 = arith.cmpi ne, %1, %c0_i32_0 : i32
    scf.if %2 {
      %67 = vector.broadcast %cst : f32 to vector<128x1xf32>
      %c0_37 = arith.constant 0 : index
      %c0_38 = arith.constant 0 : index
      %68 = vector.load %arg7[%c0_37, %c0_38] : memref<128x1xf32, #tpu.memory_space<vmem>>, vector<128x1xf32>
      tpu.vector_store %arg7[%c0_37, %c0_38], %67 {strides = array<i32>} : memref<128x1xf32, #tpu.memory_space<vmem>>, vector<128x1xf32>,
      %69 = vector.broadcast %cst : f32 to vector<128x1xf32>
      %c0_39 = arith.constant 0 : index
      %c0_40 = arith.constant 0 : index
      %70 = vector.load %arg9[%c0_39, %c0_40] : memref<128x1xf32, #tpu.memory_space<vmem>>, vector<128x1xf32>
      tpu.vector_store %arg9[%c0_39, %c0_40], %69 {strides = array<i32>} : memref<128x1xf32, #tpu.memory_space<vmem>>, vector<128x1xf32>,
      %cst_41 = arith.constant 0.000000e+00 : f32
      %71 = vector.broadcast %cst_41 : f32 to vector<128x1xf32>
      %c0_42 = arith.constant 0 : index
      %c0_43 = arith.constant 0 : index
      %72 = vector.load %arg8[%c0_42, %c0_43] : memref<128x1xf32, #tpu.memory_space<vmem>>, vector<128x1xf32>
      tpu.vector_store %arg8[%c0_42, %c0_43], %71 {strides = array<i32>} : memref<128x1xf32, #tpu.memory_space<vmem>>, vector<128x1xf32>,
      %cst_44 = arith.constant 0.000000e+00 : f32
      %73 = vector.broadcast %cst_44 : f32 to vector<128x1xf32>
      %c0_45 = arith.constant 0 : index
      %c0_46 = arith.constant 0 : index
      %74 = vector.load %arg10[%c0_45, %c0_46] : memref<128x1xf32, #tpu.memory_space<vmem>>, vector<128x1xf32>
      tpu.vector_store %arg10[%c0_45, %c0_46], %73 {strides = array<i32>} : memref<128x1xf32, #tpu.memory_space<vmem>>, vector<128x1xf32>,
    } else {
    }
    %c0 = arith.constant 0 : index
    %c0_1 = arith.constant 0 : index
    %3 = vector.load %arg2[%c0, %c0_1] : memref<128x128xf32, #tpu.memory_space<vmem>>, vector<128x128xf32>
    %c0_2 = arith.constant 0 : index
    %c0_3 = arith.constant 0 : index
    %4 = vector.load %arg3[%c0_2, %c0_3] : memref<128x128xf32, #tpu.memory_space<vmem>>, vector<128x128xf32>
    %cst_4 = arith.constant dense<0.000000e+00> : vector<128x128xf32>
    %5 = tpu.matmul %3, %4, %cst_4 {dimension_numbers = #tpu.dot_dimension_numbers<[1], [0], [0], [1], [0, 0, 1, 1], [], []>} : vector<128x128xf32>, vector<128x128xf32>, vector<128x128xf32> -> vector<128x128xf32>
    %c0_5 = arith.constant 0 : index
    %c0_6 = arith.constant 0 : index
    %6 = vector.load %arg4[%c0_5, %c0_6] : memref<128x1xi32, #tpu.memory_space<vmem>>, vector<128x1xi32>
    %c0_7 = arith.constant 0 : index
    %c0_8 = arith.constant 0 : index
    %7 = vector.load %arg5[%c0_7, %c0_8] : memref<1x128xi32, #tpu.memory_space<vmem>>, vector<1x128xi32>
    %8 = vector.broadcast %6 : vector<128x1xi32> to vector<128x128xi32>
    %9 = vector.broadcast %7 : vector<1x128xi32> to vector<128x128xi32>
    %10 = arith.cmpi eq, %8, %9 : vector<128x128xi32>
    %c128_i32 = arith.constant 128 : i32
    %11 = arith.muli %arg1, %c128_i32 : i32
    %12 = tpu.iota {dimensions = array<i32: 1>} : vector<1x128xi32>
    %13 = vector.broadcast %11 : i32 to vector<1x128xi32>
    %14 = arith.addi %13, %12 : vector<1x128xi32>
    %c8_i32 = arith.constant 8 : i32
    %15 = vector.broadcast %c8_i32 : i32 to vector<1x128xi32>
    %16 = arith.cmpi slt, %14, %15 : vector<1x128xi32>
    %17 = vector.broadcast %16 : vector<1x128xi1> to vector<128x128xi1>
    %18 = arith.andi %10, %17 : vector<128x128xi1>
    %cst_9 = arith.constant dense<true> : vector<128x128xi1>
    %19 = arith.xori %10, %cst_9 : vector<128x128xi1>
    %20 = vector.broadcast %16 : vector<1x128xi1> to vector<128x128xi1>
    %21 = arith.andi %19, %20 : vector<128x128xi1>
    %cst_10 = arith.constant 9.000000e+00 : f32
    %22 = vector.broadcast %cst_10 : f32 to vector<128x128xf32>
    %23 = arith.subf %22, %5 : vector<128x128xf32>
    %cst_11 = arith.constant -3.000000e+02 : f32
    %24 = vector.broadcast %cst_11 : f32 to vector<128x128xf32>
    %25 = arith.select %18, %23, %24 : vector<128x128xi1>, vector<128x128xf32>
    %cst_12 = arith.constant -3.000000e+02 : f32
    %26 = vector.broadcast %cst_12 : f32 to vector<128x128xf32>
    %27 = arith.select %21, %5, %26 : vector<128x128xi1>, vector<128x128xf32>
    %c0_13 = arith.constant 0 : index
    %c0_14 = arith.constant 0 : index
    %28 = vector.load %arg7[%c0_13, %c0_14] : memref<128x1xf32, #tpu.memory_space<vmem>>, vector<128x1xf32>
    %c0_15 = arith.constant 0 : index
    %c0_16 = arith.constant 0 : index
    %29 = vector.load %arg9[%c0_15, %c0_16] : memref<128x1xf32, #tpu.memory_space<vmem>>, vector<128x1xf32>
    %cst_17 = arith.constant dense<0xFF800000> : vector<128xf32>
    %30 = vector.multi_reduction <maximumf>, %25, %cst_17 [1] : vector<128x128xf32> to vector<128xf32>
    %31 = vector.shape_cast %30 : vector<128xf32> to vector<128x1xf32>
    %32 = arith.maximumf %28, %31 : vector<128x1xf32>
    %cst_18 = arith.constant dense<0xFF800000> : vector<128xf32>
    %33 = vector.multi_reduction <maximumf>, %27, %cst_18 [1] : vector<128x128xf32> to vector<128xf32>
    %34 = vector.shape_cast %33 : vector<128xf32> to vector<128x1xf32>
    %35 = arith.maximumf %29, %34 : vector<128x1xf32>
    %36 = vector.broadcast %32 : vector<128x1xf32> to vector<128x128xf32>
    %37 = arith.subf %25, %36 : vector<128x128xf32>
    %38 = vector.broadcast %35 : vector<128x1xf32> to vector<128x128xf32>
    %39 = arith.subf %27, %38 : vector<128x128xf32>
    %40 = arith.select %18, %37, %39 : vector<128x128xi1>, vector<128x128xf32>
    %41 = math.exp %40 : vector<128x128xf32>
    %c0_19 = arith.constant 0 : index
    %c0_20 = arith.constant 0 : index
    %42 = vector.load %arg8[%c0_19, %c0_20] : memref<128x1xf32, #tpu.memory_space<vmem>>, vector<128x1xf32>
    %43 = arith.subf %28, %32 : vector<128x1xf32>
    %44 = math.exp %43 : vector<128x1xf32>
    %45 = arith.mulf %42, %44 : vector<128x1xf32>
    %cst_21 = arith.constant 0.000000e+00 : f32
    %46 = vector.broadcast %cst_21 : f32 to vector<128x128xf32>
    %47 = arith.select %18, %41, %46 : vector<128x128xi1>, vector<128x128xf32>
    %cst_22 = arith.constant dense<0.000000e+00> : vector<128xf32>
    %48 = vector.multi_reduction <add>, %47, %cst_22 [1] : vector<128x128xf32> to vector<128xf32>
    %49 = vector.shape_cast %48 : vector<128xf32> to vector<128x1xf32>
    %50 = arith.addf %45, %49 : vector<128x1xf32>
    %c0_23 = arith.constant 0 : index
    %c0_24 = arith.constant 0 : index
    %51 = vector.load %arg8[%c0_23, %c0_24] : memref<128x1xf32, #tpu.memory_space<vmem>>, vector<128x1xf32>
    tpu.vector_store %arg8[%c0_23, %c0_24], %50 {strides = array<i32>} : memref<128x1xf32, #tpu.memory_space<vmem>>, vector<128x1xf32>,
    %c0_25 = arith.constant 0 : index
    %c0_26 = arith.constant 0 : index
    %52 = vector.load %arg10[%c0_25, %c0_26] : memref<128x1xf32, #tpu.memory_space<vmem>>, vector<128x1xf32>
    %53 = arith.subf %29, %35 : vector<128x1xf32>
    %54 = math.exp %53 : vector<128x1xf32>
    %55 = arith.mulf %52, %54 : vector<128x1xf32>
    %cst_27 = arith.constant 0.000000e+00 : f32
    %56 = vector.broadcast %cst_27 : f32 to vector<128x128xf32>
    %57 = arith.select %21, %41, %56 : vector<128x128xi1>, vector<128x128xf32>
    %cst_28 = arith.constant dense<0.000000e+00> : vector<128xf32>
    %58 = vector.multi_reduction <add>, %57, %cst_28 [1] : vector<128x128xf32> to vector<128xf32>
    %59 = vector.shape_cast %58 : vector<128xf32> to vector<128x1xf32>
    %60 = arith.addf %55, %59 : vector<128x1xf32>
    %c0_29 = arith.constant 0 : index
    %c0_30 = arith.constant 0 : index
    %61 = vector.load %arg10[%c0_29, %c0_30] : memref<128x1xf32, #tpu.memory_space<vmem>>, vector<128x1xf32>
    tpu.vector_store %arg10[%c0_29, %c0_30], %60 {strides = array<i32>} : memref<128x1xf32, #tpu.memory_space<vmem>>, vector<128x1xf32>,
    %c0_31 = arith.constant 0 : index
    %c0_32 = arith.constant 0 : index
    %62 = vector.load %arg7[%c0_31, %c0_32] : memref<128x1xf32, #tpu.memory_space<vmem>>, vector<128x1xf32>
    tpu.vector_store %arg7[%c0_31, %c0_32], %32 {strides = array<i32>} : memref<128x1xf32, #tpu.memory_space<vmem>>, vector<128x1xf32>,
    %c0_33 = arith.constant 0 : index
    %c0_34 = arith.constant 0 : index
    %63 = vector.load %arg9[%c0_33, %c0_34] : memref<128x1xf32, #tpu.memory_space<vmem>>, vector<128x1xf32>
    tpu.vector_store %arg9[%c0_33, %c0_34], %35 {strides = array<i32>} : memref<128x1xf32, #tpu.memory_space<vmem>>, vector<128x1xf32>,
    %c0_i32_35 = arith.constant 0 : i32
    %64 = arith.cmpi eq, %arg1, %c0_i32_35 : i32
    %65 = arith.extui %64 : i1 to i32
    %c0_i32_36 = arith.constant 0 : i32
    %66 = arith.cmpi ne, %65, %c0_i32_36 : i32
    scf.if %66 {
      %c0_37 = arith.constant 0 : index
      %c0_38 = arith.constant 0 : index
      %67 = vector.load %arg7[%c0_37, %c0_38] : memref<128x1xf32, #tpu.memory_space<vmem>>, vector<128x1xf32>
      %c0_39 = arith.constant 0 : index
      %c0_40 = arith.constant 0 : index
      %68 = vector.load %arg8[%c0_39, %c0_40] : memref<128x1xf32, #tpu.memory_space<vmem>>, vector<128x1xf32>
      %69 = math.log %68 : vector<128x1xf32>
      %70 = arith.addf %67, %69 : vector<128x1xf32>
      %c0_41 = arith.constant 0 : index
      %c0_42 = arith.constant 0 : index
      %71 = vector.load %arg9[%c0_41, %c0_42] : memref<128x1xf32, #tpu.memory_space<vmem>>, vector<128x1xf32>
      %c0_43 = arith.constant 0 : index
      %c0_44 = arith.constant 0 : index
      %72 = vector.load %arg10[%c0_43, %c0_44] : memref<128x1xf32, #tpu.memory_space<vmem>>, vector<128x1xf32>
      %73 = math.log %72 : vector<128x1xf32>
      %74 = arith.addf %71, %73 : vector<128x1xf32>
      %75 = arith.addf %70, %74 : vector<128x1xf32>
      %cst_45 = arith.constant 0.000000e+00 : f32
      %76 = vector.broadcast %cst_45 : f32 to vector<128x1xf32>
      %77 = arith.maximumf %75, %76 : vector<128x1xf32>
      %78 = math.absf %75 : vector<128x1xf32>
      %cst_46 = arith.constant 0.000000e+00 : f32
      %79 = vector.broadcast %cst_46 : f32 to vector<128x1xf32>
      %80 = arith.subf %79, %78 : vector<128x1xf32>
      %81 = math.exp %80 : vector<128x1xf32>
      %82 = math.log1p %81 : vector<128x1xf32>
      %83 = arith.addf %77, %82 : vector<128x1xf32>
      %84 = vector.shape_cast %83 : vector<128x1xf32> to vector<128x1xf32>
      %85 = vector.broadcast %84 : vector<128x1xf32> to vector<128x128xf32>
      %c0_47 = arith.constant 0 : index
      %c0_48 = arith.constant 0 : index
      %86 = vector.load %arg6[%c0_47, %c0_48] : memref<128x128xf32, #tpu.memory_space<vmem>>, vector<128x128xf32>
      tpu.vector_store %arg6[%c0_47, %c0_48], %85 {strides = array<i32>} : memref<128x128xf32, #tpu.memory_space<vmem>>, vector<128x128xf32>,
    } else {
    }
    return
  }
  func.func @transform_0(%arg0: i32, %arg1: i32) -> (i32, i32) {
    %c0_i32 = arith.constant 0 : i32
    %c0_i32_0 = arith.constant 0 : i32
    return %arg0, %c0_i32 : i32, i32
  }
  func.func @transform_1(%arg0: i32, %arg1: i32) -> (i32, i32) {
    %c0_i32 = arith.constant 0 : i32
    %c0_i32_0 = arith.constant 0 : i32
    return %c0_i32, %arg1 : i32, i32
  }
  func.func @transform_2(%arg0: i32, %arg1: i32) -> (i32, i32) {
    %c0_i32 = arith.constant 0 : i32
    %c0_i32_0 = arith.constant 0 : i32
    return %arg0, %c0_i32 : i32, i32
  }
  func.func @transform_3(%arg0: i32, %arg1: i32) -> (i32, i32) {
    %c0_i32 = arith.constant 0 : i32
    %c0_i32_0 = arith.constant 0 : i32
    return %c0_i32, %arg1 : i32, i32
  }
  func.func @transform_4(%arg0: i32, %arg1: i32) -> (i32, i32) {
    %c0_i32 = arith.constant 0 : i32
    %c0_i32_0 = arith.constant 0 : i32
    return %arg0, %c0_i32 : i32, i32
  }
}

</mosaic_0001>

<llo_original>
// kernel: tpu_custom_call.1
$region0: #{tpu_custom_call.1}
  #allocation0 [shape = 'u32[]', space=smem, size = 0x4, offset = 0x4, fixed_abs, tag = 'smem constant byte address 0x4 - core index']
  #allocation1 [shape = 'u32[144,128]{1,0:T(1,128)}', space=vmem, size = 0x12000, scoped, tag = 'internal scratch']
  #allocation2 [shape = 'f32[128,1]{1,0:T(8,128)}', space=vmem, size = 0x10000, scoped, tag = 'scratch operand']
  #allocation3 [shape = 'f32[128,1]{1,0:T(8,128)}', space=vmem, size = 0x10000, scoped, tag = 'scratch operand']
  #allocation4 [shape = 'f32[128,1]{1,0:T(8,128)}', space=vmem, size = 0x10000, scoped, tag = 'scratch operand']
  #allocation5 [shape = 'f32[128,1]{1,0:T(8,128)}', space=vmem, size = 0x10000, scoped, tag = 'scratch operand']
  %s0 = inlined_call_operand.vmem [shape: f32[128,128], index: 0, kind: input, shape index: {}]
  %s1 = inlined_call_operand.hbm [shape: f32[128,128], index: 1, kind: input, shape index: {}]
  %s2 = inlined_call_operand.vmem [shape: s32[128,1], index: 2, kind: input, shape index: {}]
  %s3 = inlined_call_operand.vmem [shape: s32[1,128], index: 3, kind: input, shape index: {}]
  %s4 = inlined_call_operand.hbm [shape: f32[128,128], index: 4, kind: output, shape index: {}]
  %s5 = sld [smem:[#allocation0]]
  $region38: #{tpu_custom_call.1} parent=0
    _
  %s7 = ssub.s32 1, %s5
  %s8 = scalar_select 0, %s7, %s5
  $region1: #{tpu_custom_call.1} parent=0
    #allocation6 [shape = 'u8[65536]{0}', space=vmem, size = 0x10000, scoped, tag = 'input window, operand 1, single buffered']
    #allocation7 [shape = 's32[1]{0}', space=sflag, size = 0x4, scoped, tag = 'scoped memory for tpu_custom_call.1']
    #allocation8 [shape = 's32[1]{0}', space=sflag, size = 0x4, scoped, tag = 'scoped memory for tpu_custom_call.1']
    #allocation9 [shape = 'u8[65536]{0}', space=vmem, size = 0x10000, scoped, tag = 'output window, operand 0, single buffered']
    %9 = vsyncpa [#allocation7], 0
    %10 = vsyncpa [#allocation8], 0
    // Predicated region
    $region2: #{tpu_custom_call.1} parent=1 // pred_check
      _
    $region3: #{tpu_custom_call.1} parent=1 // pred_check_branch
      %12 = sbr.rel (0) target = $region5
    $region4: #{tpu_custom_call.1} parent=1 // pred_region
      _
    $region5: #{tpu_custom_call.1} parent=1 // pred_fallthru
      _
    // Predicated region
    $region6: #{tpu_custom_call.1} parent=1 // pred_check
      _
    $region7: #{tpu_custom_call.1} parent=1 // pred_check_branch
      %14 = sbr.rel (0) target = $region9
    $region8: #{tpu_custom_call.1} parent=1 // pred_region
      %s16 = ssub.s32 2048, 2048
      %17 = vsyncadd [#allocation7], %s16
      %s18 = sshll.u32 [#allocation6], 4
      %s19 = int_to_ptr.vmem [resolvable:$true] %s18
      %24 = dma.hbm_to_vmem [thread:$0]  %s1, 2048, %s19, [#allocation7], 128, 128, 8
    $region9: #{tpu_custom_call.1} parent=1 // pred_fallthru
      _
    // Predicated region
    $region10: #{tpu_custom_call.1} parent=1 // pred_check
      _
    $region11: #{tpu_custom_call.1} parent=1 // pred_check_branch
      %26 = sbr.rel (0) target = $region13
    $region12: #{tpu_custom_call.1} parent=1 // pred_region
      _
    $region13: #{tpu_custom_call.1} parent=1 // pred_fallthru
      _
    // Predicated region
    $region14: #{tpu_custom_call.1} parent=1 // pred_check
      _
    $region15: #{tpu_custom_call.1} parent=1 // pred_check_branch
      %28 = sbr.rel (0) target = $region17
    $region16: #{tpu_custom_call.1} parent=1 // pred_region
      _
    $region17: #{tpu_custom_call.1} parent=1 // pred_fallthru
      _
    // Predicated region
    $region18: #{tpu_custom_call.1} parent=1 // pred_check
      _
    $region19: #{tpu_custom_call.1} parent=1 // pred_check_branch
      %30 = sbr.rel (0) target = $region21
    $region20: #{tpu_custom_call.1} parent=1 // pred_region
      %31 = dma.done [#allocation7], 2048
    $region21: #{tpu_custom_call.1} parent=1 // pred_fallthru
      _
    %p32 = scmp.eq.s32.totalorder 0, 0
    // Predicated region
    $region22: #{tpu_custom_call.1} parent=1 // pred_check
      %p33 = pneg %p32
    $region23: #{tpu_custom_call.1} parent=1 // pred_check_branch
      %35 = sbr.rel (%p33) target = $region25
    $region24: #{tpu_custom_call.1} parent=1 // pred_region
      %vm36 = vcmask 7168
      %37 = vst.msk [vmem:[#allocation2] sm:$0xff] %vm36, -300.0
      %38 = vst.msk [vmem:[#allocation2 + $0x8] sm:$0xff] %vm36, -300.0
      %39 = vst.msk [vmem:[#allocation2 + $0x10] sm:$0xff] %vm36, -300.0
      %40 = vst.msk [vmem:[#allocation2 + $0x18] sm:$0xff] %vm36, -300.0
      %41 = vst.msk [vmem:[#allocation2 + $0x20] sm:$0xff] %vm36, -300.0
      %42 = vst.msk [vmem:[#allocation2 + $0x28] sm:$0xff] %vm36, -300.0
      %43 = vst.msk [vmem:[#allocation2 + $0x30] sm:$0xff] %vm36, -300.0
      %44 = vst.msk [vmem:[#allocation2 + $0x38] sm:$0xff] %vm36, -300.0
      %45 = vst.msk [vmem:[#allocation2 + $0x40] sm:$0xff] %vm36, -300.0
      %46 = vst.msk [vmem:[#allocation2 + $0x48] sm:$0xff] %vm36, -300.0
      %47 = vst.msk [vmem:[#allocation2 + $0x50] sm:$0xff] %vm36, -300.0
      %48 = vst.msk [vmem:[#allocation2 + $0x58] sm:$0xff] %vm36, -300.0
      %49 = vst.msk [vmem:[#allocation2 + $0x60] sm:$0xff] %vm36, -300.0
      %50 = vst.msk [vmem:[#allocation2 + $0x68] sm:$0xff] %vm36, -300.0
      %51 = vst.msk [vmem:[#allocation2 + $0x70] sm:$0xff] %vm36, -300.0
      %52 = vst.msk [vmem:[#allocation2 + $0x78] sm:$0xff] %vm36, -300.0
      %53 = vst.msk [vmem:[#allocation4] sm:$0xff] %vm36, -300.0
      %54 = vst.msk [vmem:[#allocation4 + $0x8] sm:$0xff] %vm36, -300.0
      %55 = vst.msk [vmem:[#allocation4 + $0x10] sm:$0xff] %vm36, -300.0
      %56 = vst.msk [vmem:[#allocation4 + $0x18] sm:$0xff] %vm36, -300.0
      %57 = vst.msk [vmem:[#allocation4 + $0x20] sm:$0xff] %vm36, -300.0
      %58 = vst.msk [vmem:[#allocation4 + $0x28] sm:$0xff] %vm36, -300.0
      %59 = vst.msk [vmem:[#allocation4 + $0x30] sm:$0xff] %vm36, -300.0
      %60 = vst.msk [vmem:[#allocation4 + $0x38] sm:$0xff] %vm36, -300.0
      %61 = vst.msk [vmem:[#allocation4 + $0x40] sm:$0xff] %vm36, -300.0
      %62 = vst.msk [vmem:[#allocation4 + $0x48] sm:$0xff] %vm36, -300.0
      %63 = vst.msk [vmem:[#allocation4 + $0x50] sm:$0xff] %vm36, -300.0
      %64 = vst.msk [vmem:[#allocation4 + $0x58] sm:$0xff] %vm36, -300.0
      %65 = vst.msk [vmem:[#allocation4 + $0x60] sm:$0xff] %vm36, -300.0
      %66 = vst.msk [vmem:[#allocation4 + $0x68] sm:$0xff] %vm36, -300.0
      %67 = vst.msk [vmem:[#allocation4 + $0x70] sm:$0xff] %vm36, -300.0
      %68 = vst.msk [vmem:[#allocation4 + $0x78] sm:$0xff] %vm36, -300.0
      %69 = vst.msk [vmem:[#allocation3] sm:$0xff] %vm36, 0.0
      %70 = vst.msk [vmem:[#allocation3 + $0x8] sm:$0xff] %vm36, 0.0
      %71 = vst.msk [vmem:[#allocation3 + $0x10] sm:$0xff] %vm36, 0.0
      %72 = vst.msk [vmem:[#allocation3 + $0x18] sm:$0xff] %vm36, 0.0
      %73 = vst.msk [vmem:[#allocation3 + $0x20] sm:$0xff] %vm36, 0.0
      %74 = vst.msk [vmem:[#allocation3 + $0x28] sm:$0xff] %vm36, 0.0
      %75 = vst.msk [vmem:[#allocation3 + $0x30] sm:$0xff] %vm36, 0.0
      %76 = vst.msk [vmem:[#allocation3 + $0x38] sm:$0xff] %vm36, 0.0
      %77 = vst.msk [vmem:[#allocation3 + $0x40] sm:$0xff] %vm36, 0.0
      %78 = vst.msk [vmem:[#allocation3 + $0x48] sm:$0xff] %vm36, 0.0
      %79 = vst.msk [vmem:[#allocation3 + $0x50] sm:$0xff] %vm36, 0.0
      %80 = vst.msk [vmem:[#allocation3 + $0x58] sm:$0xff] %vm36, 0.0
      %81 = vst.msk [vmem:[#allocation3 + $0x60] sm:$0xff] %vm36, 0.0
      %82 = vst.msk [vmem:[#allocation3 + $0x68] sm:$0xff] %vm36, 0.0
      %83 = vst.msk [vmem:[#allocation3 + $0x70] sm:$0xff] %vm36, 0.0
      %84 = vst.msk [vmem:[#allocation3 + $0x78] sm:$0xff] %vm36, 0.0
      %85 = vst.msk [vmem:[#allocation5] sm:$0xff] %vm36, 0.0
      %86 = vst.msk [vmem:[#allocation5 + $0x8] sm:$0xff] %vm36, 0.0
      %87 = vst.msk [vmem:[#allocation5 + $0x10] sm:$0xff] %vm36, 0.0
      %88 = vst.msk [vmem:[#allocation5 + $0x18] sm:$0xff] %vm36, 0.0
      %89 = vst.msk [vmem:[#allocation5 + $0x20] sm:$0xff] %vm36, 0.0
      %90 = vst.msk [vmem:[#allocation5 + $0x28] sm:$0xff] %vm36, 0.0
      %91 = vst.msk [vmem:[#allocation5 + $0x30] sm:$0xff] %vm36, 0.0
      %92 = vst.msk [vmem:[#allocation5 + $0x38] sm:$0xff] %vm36, 0.0
      %93 = vst.msk [vmem:[#allocation5 + $0x40] sm:$0xff] %vm36, 0.0
      %94 = vst.msk [vmem:[#allocation5 + $0x48] sm:$0xff] %vm36, 0.0
      %95 = vst.msk [vmem:[#allocation5 + $0x50] sm:$0xff] %vm36, 0.0
      %96 = vst.msk [vmem:[#allocation5 + $0x58] sm:$0xff] %vm36, 0.0
      %97 = vst.msk [vmem:[#allocation5 + $0x60] sm:$0xff] %vm36, 0.0
      %98 = vst.msk [vmem:[#allocation5 + $0x68] sm:$0xff] %vm36, 0.0
      %99 = vst.msk [vmem:[#allocation5 + $0x70] sm:$0xff] %vm36, 0.0
      %100 = vst.msk [vmem:[#allocation5 + $0x78] sm:$0xff] %vm36, 0.0
    $region25: #{tpu_custom_call.1} parent=1 // pred_fallthru
      _
    %v101 = vld [vmem:[%s0] sm:$0xff]
    %v102 = vld [vmem:[%s0 + $0x8] sm:$0xff]
    %v103 = vld [vmem:[%s0 + $0x10] sm:$0xff]
    %v104 = vld [vmem:[%s0 + $0x18] sm:$0xff]
    %v105 = vld [vmem:[%s0 + $0x20] sm:$0xff]
    %v106 = vld [vmem:[%s0 + $0x28] sm:$0xff]
    %v107 = vld [vmem:[%s0 + $0x30] sm:$0xff]
    %v108 = vld [vmem:[%s0 + $0x38] sm:$0xff]
    %v109 = vld [vmem:[%s0 + $0x40] sm:$0xff]
    %v110 = vld [vmem:[%s0 + $0x48] sm:$0xff]
    %v111 = vld [vmem:[%s0 + $0x50] sm:$0xff]
    %v112 = vld [vmem:[%s0 + $0x58] sm:$0xff]
    %v113 = vld [vmem:[%s0 + $0x60] sm:$0xff]
    %v114 = vld [vmem:[%s0 + $0x68] sm:$0xff]
    %v115 = vld [vmem:[%s0 + $0x70] sm:$0xff]
    %v116 = vld [vmem:[%s0 + $0x78] sm:$0xff]
    %v117 = vld [vmem:[#allocation6] sm:$0xff]
    %v118 = vld [vmem:[#allocation6 + $0x8] sm:$0xff]
    %v119 = vld [vmem:[#allocation6 + $0x10] sm:$0xff]
    %v120 = vld [vmem:[#allocation6 + $0x18] sm:$0xff]
    %v121 = vld [vmem:[#allocation6 + $0x20] sm:$0xff]
    %v122 = vld [vmem:[#allocation6 + $0x28] sm:$0xff]
    %v123 = vld [vmem:[#allocation6 + $0x30] sm:$0xff]
    %v124 = vld [vmem:[#allocation6 + $0x38] sm:$0xff]
    %v125 = vld [vmem:[#allocation6 + $0x40] sm:$0xff]
    %v126 = vld [vmem:[#allocation6 + $0x48] sm:$0xff]
    %v127 = vld [vmem:[#allocation6 + $0x50] sm:$0xff]
    %v128 = vld [vmem:[#allocation6 + $0x58] sm:$0xff]
    %v129 = vld [vmem:[#allocation6 + $0x60] sm:$0xff]
    %v130 = vld [vmem:[#allocation6 + $0x68] sm:$0xff]
    %v131 = vld [vmem:[#allocation6 + $0x70] sm:$0xff]
    %v132 = vld [vmem:[#allocation6 + $0x78] sm:$0xff]
    %133 = vmatprep.subr.mxu0 0.0
    %134 = vmatpush1.msra.mxu0 %v132
    %135 = vmatprep.subr.mxu0 0.0
    %136 = vmatpush1.msra.mxu0 %v131
    %137 = vmatprep.subr.mxu0 0.0
    %138 = vmatpush1.msra.mxu0 %v130
    %139 = vmatprep.subr.mxu0 0.0
    %140 = vmatpush1.msra.mxu0 %v129
    %141 = vmatprep.subr.mxu0 0.0
    %142 = vmatpush1.msra.mxu0 %v128
    %143 = vmatprep.subr.mxu0 0.0
    %144 = vmatpush1.msra.mxu0 %v127
    %145 = vmatprep.subr.mxu0 0.0
    %146 = vmatpush1.msra.mxu0 %v126
    %147 = vmatprep.subr.mxu0 0.0
    %148 = vmatpush1.msra.mxu0 %v125
    %149 = vmatprep.subr.mxu0 0.0
    %150 = vmatpush1.msra.mxu0 %v124
    %151 = vmatprep.subr.mxu0 0.0
    %152 = vmatpush1.msra.mxu0 %v123
    %153 = vmatprep.subr.mxu0 0.0
    %154 = vmatpush1.msra.mxu0 %v122
    %155 = vmatprep.subr.mxu0 0.0
    %156 = vmatpush1.msra.mxu0 %v121
    %157 = vmatprep.subr.mxu0 0.0
    %158 = vmatpush1.msra.mxu0 %v120
    %159 = vmatprep.subr.mxu0 0.0
    %160 = vmatpush1.msra.mxu0 %v119
    %161 = vmatprep.subr.mxu0 0.0
    %162 = vmatpush1.msra.mxu0 %v118
    %163 = vmatprep.subr.mxu0 0.0
    %164 = vmatpush1.msra.mxu0 %v117
    %165 = vmatprep.subr.mxu0 0.0
    %166 = vmatpush2.msra.mxu0 0.0
    %167 = vmatprep.subr.mxu0 0.0
    %168 = vmatpush2.msra.mxu0 0.0
    %169 = vmatprep.subr.mxu0 0.0
    %170 = vmatpush2.msra.mxu0 0.0
    %171 = vmatprep.subr.mxu0 0.0
    %172 = vmatpush2.msra.mxu0 0.0
    %173 = vmatprep.subr.mxu0 0.0
    %174 = vmatpush2.msra.mxu0 0.0
    %175 = vmatprep.subr.mxu0 0.0
    %176 = vmatpush2.msra.mxu0 0.0
    %177 = vmatprep.subr.mxu0 0.0
    %178 = vmatpush2.msra.mxu0 0.0
    %179 = vmatprep.subr.mxu0 0.0
    %180 = vmatpush2.msra.mxu0 0.0
    %181 = vmatprep.subr.mxu0 0.0
    %182 = vmatpush2.msra.mxu0 0.0
    %183 = vmatprep.subr.mxu0 0.0
    %184 = vmatpush2.msra.mxu0 0.0
    %185 = vmatprep.subr.mxu0 0.0
    %186 = vmatpush2.msra.mxu0 0.0
    %187 = vmatprep.subr.mxu0 0.0
    %188 = vmatpush2.msra.mxu0 0.0
    %189 = vmatprep.subr.mxu0 0.0
    %190 = vmatpush2.msra.mxu0 0.0
    %191 = vmatprep.subr.mxu0 0.0
    %192 = vmatpush2.msra.mxu0 0.0
    %193 = vmatprep.subr.mxu0 0.0
    %194 = vmatpush2.msra.mxu0 0.0
    %195 = vmatprep.subr.mxu0 0.0
    %196 = vmatpush2.msra.mxu0 0.0
    %197 = vmatprep.mubr.f32.mxu0 0.0
    %198 = vmatmul.mubr.f32.gmra.mxu0 %v101
    %v199 = vpop.f32.mrf.mxu0
    %v200 = vadd.f32 0.0, %v199
    %v201 = vpop.f32.mrf.mxu0
    %202 = vmatprep.mubr.f32.mxu0 0.0
    %203 = vmatmul.mubr.f32.gmra.mxu0 %v102
    %v204 = vpop.f32.mrf.mxu0
    %v205 = vadd.f32 0.0, %v204
    %v206 = vpop.f32.mrf.mxu0
    %207 = vmatprep.mubr.f32.mxu0 0.0
    %208 = vmatmul.mubr.f32.gmra.mxu0 %v103
    %v209 = vpop.f32.mrf.mxu0
    %v210 = vadd.f32 0.0, %v209
    %v211 = vpop.f32.mrf.mxu0
    %212 = vmatprep.mubr.f32.mxu0 0.0
    %213 = vmatmul.mubr.f32.gmra.mxu0 %v104
    %v214 = vpop.f32.mrf.mxu0
    %v215 = vadd.f32 0.0, %v214
    %v216 = vpop.f32.mrf.mxu0
    %217 = vmatprep.mubr.f32.mxu0 0.0
    %218 = vmatmul.mubr.f32.gmra.mxu0 %v105
    %v219 = vpop.f32.mrf.mxu0
    %v220 = vadd.f32 0.0, %v219
    %v221 = vpop.f32.mrf.mxu0
    %222 = vmatprep.mubr.f32.mxu0 0.0
    %223 = vmatmul.mubr.f32.gmra.mxu0 %v106
    %v224 = vpop.f32.mrf.mxu0
    %v225 = vadd.f32 0.0, %v224
    %v226 = vpop.f32.mrf.mxu0
    %227 = vmatprep.mubr.f32.mxu0 0.0
    %228 = vmatmul.mubr.f32.gmra.mxu0 %v107
    %v229 = vpop.f32.mrf.mxu0
    %v230 = vadd.f32 0.0, %v229
    %v231 = vpop.f32.mrf.mxu0
    %232 = vmatprep.mubr.f32.mxu0 0.0
    %233 = vmatmul.mubr.f32.gmra.mxu0 %v108
    %v234 = vpop.f32.mrf.mxu0
    %v235 = vadd.f32 0.0, %v234
    %v236 = vpop.f32.mrf.mxu0
    %237 = vmatprep.mubr.f32.mxu0 0.0
    %238 = vmatmul.mubr.f32.gmra.mxu0 %v109
    %v239 = vpop.f32.mrf.mxu0
    %v240 = vadd.f32 0.0, %v239
    %v241 = vpop.f32.mrf.mxu0
    %242 = vmatprep.mubr.f32.mxu0 0.0
    %243 = vmatmul.mubr.f32.gmra.mxu0 %v110
    %v244 = vpop.f32.mrf.mxu0
    %v245 = vadd.f32 0.0, %v244
    %v246 = vpop.f32.mrf.mxu0
    %247 = vmatprep.mubr.f32.mxu0 0.0
    %248 = vmatmul.mubr.f32.gmra.mxu0 %v111
    %v249 = vpop.f32.mrf.mxu0
    %v250 = vadd.f32 0.0, %v249
    %v251 = vpop.f32.mrf.mxu0
    %252 = vmatprep.mubr.f32.mxu0 0.0
    %253 = vmatmul.mubr.f32.gmra.mxu0 %v112
    %v254 = vpop.f32.mrf.mxu0
    %v255 = vadd.f32 0.0, %v254
    %v256 = vpop.f32.mrf.mxu0
    %257 = vmatprep.mubr.f32.mxu0 0.0
    %258 = vmatmul.mubr.f32.gmra.mxu0 %v113
    %v259 = vpop.f32.mrf.mxu0
    %v260 = vadd.f32 0.0, %v259
    %v261 = vpop.f32.mrf.mxu0
    %262 = vmatprep.mubr.f32.mxu0 0.0
    %263 = vmatmul.mubr.f32.gmra.mxu0 %v114
    %v264 = vpop.f32.mrf.mxu0
    %v265 = vadd.f32 0.0, %v264
    %v266 = vpop.f32.mrf.mxu0
    %267 = vmatprep.mubr.f32.mxu0 0.0
    %268 = vmatmul.mubr.f32.gmra.mxu0 %v115
    %v269 = vpop.f32.mrf.mxu0
    %v270 = vadd.f32 0.0, %v269
    %v271 = vpop.f32.mrf.mxu0
    %272 = vmatprep.mubr.f32.mxu0 0.0
    %273 = vmatmul.mubr.f32.gmra.mxu0 %v116
    %v274 = vpop.f32.mrf.mxu0
    %v275 = vadd.f32 0.0, %v274
    %v276 = vpop.f32.mrf.mxu0
    %277 = vdwg.mxu0
    %v278 = vld [vmem:[%s2] sm:$0xff]
    %v279 = vld [vmem:[%s2 + $0x8] sm:$0xff]
    %v280 = vld [vmem:[%s2 + $0x10] sm:$0xff]
    %v281 = vld [vmem:[%s2 + $0x18] sm:$0xff]
    %v282 = vld [vmem:[%s2 + $0x20] sm:$0xff]
    %v283 = vld [vmem:[%s2 + $0x28] sm:$0xff]
    %v284 = vld [vmem:[%s2 + $0x30] sm:$0xff]
    %v285 = vld [vmem:[%s2 + $0x38] sm:$0xff]
    %v286 = vld [vmem:[%s2 + $0x40] sm:$0xff]
    %v287 = vld [vmem:[%s2 + $0x48] sm:$0xff]
    %v288 = vld [vmem:[%s2 + $0x50] sm:$0xff]
    %v289 = vld [vmem:[%s2 + $0x58] sm:$0xff]
    %v290 = vld [vmem:[%s2 + $0x60] sm:$0xff]
    %v291 = vld [vmem:[%s2 + $0x68] sm:$0xff]
    %v292 = vld [vmem:[%s2 + $0x70] sm:$0xff]
    %v293 = vld [vmem:[%s2 + $0x78] sm:$0xff]
    %v294 = vld [vmem:[%s3] sm:$0x1]
    %295 = vset.pattern.permute.xlu0 0
    %296 = vperm.xlu0 %295, %v278
    %v297 = vpop.permute.xlu0 %296
    %298 = vset.pattern.permute.xlu0 0
    %299 = vperm.xlu0 %298, %v279
    %v300 = vpop.permute.xlu0 %299
    %301 = vset.pattern.permute.xlu0 0
    %302 = vperm.xlu0 %301, %v280
    %v303 = vpop.permute.xlu0 %302
    %304 = vset.pattern.permute.xlu0 0
    %305 = vperm.xlu0 %304, %v281
    %v306 = vpop.permute.xlu0 %305
    %307 = vset.pattern.permute.xlu0 0
    %308 = vperm.xlu0 %307, %v282
    %v309 = vpop.permute.xlu0 %308
    %310 = vset.pattern.permute.xlu0 0
    %311 = vperm.xlu0 %310, %v283
    %v312 = vpop.permute.xlu0 %311
    %313 = vset.pattern.permute.xlu0 0
    %314 = vperm.xlu0 %313, %v284
    %v315 = vpop.permute.xlu0 %314
    %316 = vset.pattern.permute.xlu0 0
    %317 = vperm.xlu0 %316, %v285
    %v318 = vpop.permute.xlu0 %317
    %319 = vset.pattern.permute.xlu0 0
    %320 = vperm.xlu0 %319, %v286
    %v321 = vpop.permute.xlu0 %320
    %322 = vset.pattern.permute.xlu0 0
    %323 = vperm.xlu0 %322, %v287
    %v324 = vpop.permute.xlu0 %323
    %325 = vset.pattern.permute.xlu0 0
    %326 = vperm.xlu0 %325, %v288
    %v327 = vpop.permute.xlu0 %326
    %328 = vset.pattern.permute.xlu0 0
    %329 = vperm.xlu0 %328, %v289
    %v330 = vpop.permute.xlu0 %329
    %331 = vset.pattern.permute.xlu0 0
    %332 = vperm.xlu0 %331, %v290
    %v333 = vpop.permute.xlu0 %332
    %334 = vset.pattern.permute.xlu0 0
    %335 = vperm.xlu0 %334, %v291
    %v336 = vpop.permute.xlu0 %335
    %337 = vset.pattern.permute.xlu0 0
    %338 = vperm.xlu0 %337, %v292
    %v339 = vpop.permute.xlu0 %338
    %340 = vset.pattern.permute.xlu0 0
    %341 = vperm.xlu0 %340, %v293
    %v342 = vpop.permute.xlu0 %341
    %v343 = vlaneseq
    %v344 = vshrl.u32 %v343, 7
    %v345 = vsub.s32 0, %v344
    %v346 = vrot.slane %v294, %v345
    %vm347 = vcmp.eq.s32.totalorder %v297, %v346
    %vm348 = vcmp.eq.s32.totalorder %v300, %v346
    %vm349 = vcmp.eq.s32.totalorder %v303, %v346
    %vm350 = vcmp.eq.s32.totalorder %v306, %v346
    %vm351 = vcmp.eq.s32.totalorder %v309, %v346
    %vm352 = vcmp.eq.s32.totalorder %v312, %v346
    %vm353 = vcmp.eq.s32.totalorder %v315, %v346
    %vm354 = vcmp.eq.s32.totalorder %v318, %v346
    %vm355 = vcmp.eq.s32.totalorder %v321, %v346
    %vm356 = vcmp.eq.s32.totalorder %v324, %v346
    %vm357 = vcmp.eq.s32.totalorder %v327, %v346
    %vm358 = vcmp.eq.s32.totalorder %v330, %v346
    %vm359 = vcmp.eq.s32.totalorder %v333, %v346
    %vm360 = vcmp.eq.s32.totalorder %v336, %v346
    %vm361 = vcmp.eq.s32.totalorder %v339, %v346
    %vm362 = vcmp.eq.s32.totalorder %v342, %v346
    %s363 = smul.u32 0, 128
    %v364 = vlaneseq
    %v365 = vand.u32 %v364, 127
    %v366 = vstv %s363
    %v367 = vadd.s32 %v366, %v365
    %vm368 = vcmp.lt.s32.totalorder %v367, 8
    %v369 = vsel %vm368, 1, 0
    %vm370 = vcmp.eq.s32.totalorder %v369, 1
    %vm371 = vmand %vm347, %vm370
    %vm372 = vmand %vm348, %vm370
    %vm373 = vmand %vm349, %vm370
    %vm374 = vmand %vm350, %vm370
    %vm375 = vmand %vm351, %vm370
    %vm376 = vmand %vm352, %vm370
    %vm377 = vmand %vm353, %vm370
    %vm378 = vmand %vm354, %vm370
    %vm379 = vmand %vm355, %vm370
    %vm380 = vmand %vm356, %vm370
    %vm381 = vmand %vm357, %vm370
    %vm382 = vmand %vm358, %vm370
    %vm383 = vmand %vm359, %vm370
    %vm384 = vmand %vm360, %vm370
    %vm385 = vmand %vm361, %vm370
    %vm386 = vmand %vm362, %vm370
    %vm387 = vmxor %vm347, 1
    %vm388 = vmxor %vm348, 1
    %vm389 = vmxor %vm349, 1
    %vm390 = vmxor %vm350, 1
    %vm391 = vmxor %vm351, 1
    %vm392 = vmxor %vm352, 1
    %vm393 = vmxor %vm353, 1
    %vm394 = vmxor %vm354, 1
    %vm395 = vmxor %vm355, 1
    %vm396 = vmxor %vm356, 1
    %vm397 = vmxor %vm357, 1
    %vm398 = vmxor %vm358, 1
    %vm399 = vmxor %vm359, 1
    %vm400 = vmxor %vm360, 1
    %vm401 = vmxor %vm361, 1
    %vm402 = vmxor %vm362, 1
    %vm403 = vmand %vm387, %vm370
    %vm404 = vmand %vm388, %vm370
    %vm405 = vmand %vm389, %vm370
    %vm406 = vmand %vm390, %vm370
    %vm407 = vmand %vm391, %vm370
    %vm408 = vmand %vm392, %vm370
    %vm409 = vmand %vm393, %vm370
    %vm410 = vmand %vm394, %vm370
    %vm411 = vmand %vm395, %vm370
    %vm412 = vmand %vm396, %vm370
    %vm413 = vmand %vm397, %vm370
    %vm414 = vmand %vm398, %vm370
    %vm415 = vmand %vm399, %vm370
    %vm416 = vmand %vm400, %vm370
    %vm417 = vmand %vm401, %vm370
    %vm418 = vmand %vm402, %vm370
    %v419 = vsub.f32 9.0, %v200
    %v420 = vsub.f32 9.0, %v205
    %v421 = vsub.f32 9.0, %v210
    %v422 = vsub.f32 9.0, %v215
    %v423 = vsub.f32 9.0, %v220
    %v424 = vsub.f32 9.0, %v225
    %v425 = vsub.f32 9.0, %v230
    %v426 = vsub.f32 9.0, %v235
    %v427 = vsub.f32 9.0, %v240
    %v428 = vsub.f32 9.0, %v245
    %v429 = vsub.f32 9.0, %v250
    %v430 = vsub.f32 9.0, %v255
    %v431 = vsub.f32 9.0, %v260
    %v432 = vsub.f32 9.0, %v265
    %v433 = vsub.f32 9.0, %v270
    %v434 = vsub.f32 9.0, %v275
    %v435 = vsel %vm371, %v419, -300.0
    %v436 = vsel %vm372, %v420, -300.0
    %v437 = vsel %vm373, %v421, -300.0
    %v438 = vsel %vm374, %v422, -300.0
    %v439 = vsel %vm375, %v423, -300.0
    %v440 = vsel %vm376, %v424, -300.0
    %v441 = vsel %vm377, %v425, -300.0
    %v442 = vsel %vm378, %v426, -300.0
    %v443 = vsel %vm379, %v427, -300.0
    %v444 = vsel %vm380, %v428, -300.0
    %v445 = vsel %vm381, %v429, -300.0
    %v446 = vsel %vm382, %v430, -300.0
    %v447 = vsel %vm383, %v431, -300.0
    %v448 = vsel %vm384, %v432, -300.0
    %v449 = vsel %vm385, %v433, -300.0
    %v450 = vsel %vm386, %v434, -300.0
    %v451 = vsel %vm403, %v200, -300.0
    %v452 = vsel %vm404, %v205, -300.0
    %v453 = vsel %vm405, %v210, -300.0
    %v454 = vsel %vm406, %v215, -300.0
    %v455 = vsel %vm407, %v220, -300.0
    %v456 = vsel %vm408, %v225, -300.0
    %v457 = vsel %vm409, %v230, -300.0
    %v458 = vsel %vm410, %v235, -300.0
    %v459 = vsel %vm411, %v240, -300.0
    %v460 = vsel %vm412, %v245, -300.0
    %v461 = vsel %vm413, %v250, -300.0
    %v462 = vsel %vm414, %v255, -300.0
    %v463 = vsel %vm415, %v260, -300.0
    %v464 = vsel %vm416, %v265, -300.0
    %v465 = vsel %vm417, %v270, -300.0
    %v466 = vsel %vm418, %v275, -300.0
    %v467 = vld [vmem:[#allocation2] sm:$0xff]
    %v468 = vld [vmem:[#allocation2 + $0x8] sm:$0xff]
    %v469 = vld [vmem:[#allocation2 + $0x10] sm:$0xff]
    %v470 = vld [vmem:[#allocation2 + $0x18] sm:$0xff]
    %v471 = vld [vmem:[#allocation2 + $0x20] sm:$0xff]
    %v472 = vld [vmem:[#allocation2 + $0x28] sm:$0xff]
    %v473 = vld [vmem:[#allocation2 + $0x30] sm:$0xff]
    %v474 = vld [vmem:[#allocation2 + $0x38] sm:$0xff]
    %v475 = vld [vmem:[#allocation2 + $0x40] sm:$0xff]
    %v476 = vld [vmem:[#allocation2 + $0x48] sm:$0xff]
    %v477 = vld [vmem:[#allocation2 + $0x50] sm:$0xff]
    %v478 = vld [vmem:[#allocation2 + $0x58] sm:$0xff]
    %v479 = vld [vmem:[#allocation2 + $0x60] sm:$0xff]
    %v480 = vld [vmem:[#allocation2 + $0x68] sm:$0xff]
    %v481 = vld [vmem:[#allocation2 + $0x70] sm:$0xff]
    %v482 = vld [vmem:[#allocation2 + $0x78] sm:$0xff]
    %v483 = vld [vmem:[#allocation4] sm:$0xff]
    %v484 = vld [vmem:[#allocation4 + $0x8] sm:$0xff]
    %v485 = vld [vmem:[#allocation4 + $0x10] sm:$0xff]
    %v486 = vld [vmem:[#allocation4 + $0x18] sm:$0xff]
    %v487 = vld [vmem:[#allocation4 + $0x20] sm:$0xff]
    %v488 = vld [vmem:[#allocation4 + $0x28] sm:$0xff]
    %v489 = vld [vmem:[#allocation4 + $0x30] sm:$0xff]
    %v490 = vld [vmem:[#allocation4 + $0x38] sm:$0xff]
    %v491 = vld [vmem:[#allocation4 + $0x40] sm:$0xff]
    %v492 = vld [vmem:[#allocation4 + $0x48] sm:$0xff]
    %v493 = vld [vmem:[#allocation4 + $0x50] sm:$0xff]
    %v494 = vld [vmem:[#allocation4 + $0x58] sm:$0xff]
    %v495 = vld [vmem:[#allocation4 + $0x60] sm:$0xff]
    %v496 = vld [vmem:[#allocation4 + $0x68] sm:$0xff]
    %v497 = vld [vmem:[#allocation4 + $0x70] sm:$0xff]
    %v498 = vld [vmem:[#allocation4 + $0x78] sm:$0xff]
    %499 = vmax.xlane.f32.xlu0 %v435
    %v500 = vpop.xlane.xlu0 %499
    %501 = vmax.xlane.f32.xlu0 %v436
    %v502 = vpop.xlane.xlu0 %501
    %503 = vmax.xlane.f32.xlu0 %v437
    %v504 = vpop.xlane.xlu0 %503
    %505 = vmax.xlane.f32.xlu0 %v438
    %v506 = vpop.xlane.xlu0 %505
    %507 = vmax.xlane.f32.xlu0 %v439
    %v508 = vpop.xlane.xlu0 %507
    %509 = vmax.xlane.f32.xlu0 %v440
    %v510 = vpop.xlane.xlu0 %509
    %511 = vmax.xlane.f32.xlu0 %v441
    %v512 = vpop.xlane.xlu0 %511
    %513 = vmax.xlane.f32.xlu0 %v442
    %v514 = vpop.xlane.xlu0 %513
    %515 = vmax.xlane.f32.xlu0 %v443
    %v516 = vpop.xlane.xlu0 %515
    %517 = vmax.xlane.f32.xlu0 %v444
    %v518 = vpop.xlane.xlu0 %517
    %519 = vmax.xlane.f32.xlu0 %v445
    %v520 = vpop.xlane.xlu0 %519
    %521 = vmax.xlane.f32.xlu0 %v446
    %v522 = vpop.xlane.xlu0 %521
    %523 = vmax.xlane.f32.xlu0 %v447
    %v524 = vpop.xlane.xlu0 %523
    %525 = vmax.xlane.f32.xlu0 %v448
    %v526 = vpop.xlane.xlu0 %525
    %527 = vmax.xlane.f32.xlu0 %v449
    %v528 = vpop.xlane.xlu0 %527
    %529 = vmax.xlane.f32.xlu0 %v450
    %v530 = vpop.xlane.xlu0 %529
    %v531 = vmax.f32 %v467, %v500
    %v532 = vmax.f32 %v468, %v502
    %v533 = vmax.f32 %v469, %v504
    %v534 = vmax.f32 %v470, %v506
    %v535 = vmax.f32 %v471, %v508
    %v536 = vmax.f32 %v472, %v510
    %v537 = vmax.f32 %v473, %v512
    %v538 = vmax.f32 %v474, %v514
    %v539 = vmax.f32 %v475, %v516
    %v540 = vmax.f32 %v476, %v518
    %v541 = vmax.f32 %v477, %v520
    %v542 = vmax.f32 %v478, %v522
    %v543 = vmax.f32 %v479, %v524
    %v544 = vmax.f32 %v480, %v526
    %v545 = vmax.f32 %v481, %v528
    %v546 = vmax.f32 %v482, %v530
    %547 = vmax.xlane.f32.xlu0 %v451
    %v548 = vpop.xlane.xlu0 %547
    %549 = vmax.xlane.f32.xlu0 %v452
    %v550 = vpop.xlane.xlu0 %549
    %551 = vmax.xlane.f32.xlu0 %v453
    %v552 = vpop.xlane.xlu0 %551
    %553 = vmax.xlane.f32.xlu0 %v454
    %v554 = vpop.xlane.xlu0 %553
    %555 = vmax.xlane.f32.xlu0 %v455
    %v556 = vpop.xlane.xlu0 %555
    %557 = vmax.xlane.f32.xlu0 %v456
    %v558 = vpop.xlane.xlu0 %557
    %559 = vmax.xlane.f32.xlu0 %v457
    %v560 = vpop.xlane.xlu0 %559
    %561 = vmax.xlane.f32.xlu0 %v458
    %v562 = vpop.xlane.xlu0 %561
    %563 = vmax.xlane.f32.xlu0 %v459
    %v564 = vpop.xlane.xlu0 %563
    %565 = vmax.xlane.f32.xlu0 %v460
    %v566 = vpop.xlane.xlu0 %565
    %567 = vmax.xlane.f32.xlu0 %v461
    %v568 = vpop.xlane.xlu0 %567
    %569 = vmax.xlane.f32.xlu0 %v462
    %v570 = vpop.xlane.xlu0 %569
    %571 = vmax.xlane.f32.xlu0 %v463
    %v572 = vpop.xlane.xlu0 %571
    %573 = vmax.xlane.f32.xlu0 %v464
    %v574 = vpop.xlane.xlu0 %573
    %575 = vmax.xlane.f32.xlu0 %v465
    %v576 = vpop.xlane.xlu0 %575
    %577 = vmax.xlane.f32.xlu0 %v466
    %v578 = vpop.xlane.xlu0 %577
    %v579 = vmax.f32 %v483, %v548
    %v580 = vmax.f32 %v484, %v550
    %v581 = vmax.f32 %v485, %v552
    %v582 = vmax.f32 %v486, %v554
    %v583 = vmax.f32 %v487, %v556
    %v584 = vmax.f32 %v488, %v558
    %v585 = vmax.f32 %v489, %v560
    %v586 = vmax.f32 %v490, %v562
    %v587 = vmax.f32 %v491, %v564
    %v588 = vmax.f32 %v492, %v566
    %v589 = vmax.f32 %v493, %v568
    %v590 = vmax.f32 %v494, %v570
    %v591 = vmax.f32 %v495, %v572
    %v592 = vmax.f32 %v496, %v574
    %v593 = vmax.f32 %v497, %v576
    %v594 = vmax.f32 %v498, %v578
    %596 = vset.pattern.permute.xlu0 0
    %597 = vperm.xlu0 %596, %v531
    %v598 = vpop.permute.xlu0 %597
    %601 = vset.pattern.permute.xlu0 0
    %602 = vperm.xlu0 %601, %v532
    %v603 = vpop.permute.xlu0 %602
    %606 = vset.pattern.permute.xlu0 0
    %607 = vperm.xlu0 %606, %v533
    %v608 = vpop.permute.xlu0 %607
    %611 = vset.pattern.permute.xlu0 0
    %612 = vperm.xlu0 %611, %v534
    %v613 = vpop.permute.xlu0 %612
    %616 = vset.pattern.permute.xlu0 0
    %617 = vperm.xlu0 %616, %v535
    %v618 = vpop.permute.xlu0 %617
    %621 = vset.pattern.permute.xlu0 0
    %622 = vperm.xlu0 %621, %v536
    %v623 = vpop.permute.xlu0 %622
    %626 = vset.pattern.permute.xlu0 0
    %627 = vperm.xlu0 %626, %v537
    %v628 = vpop.permute.xlu0 %627
    %631 = vset.pattern.permute.xlu0 0
    %632 = vperm.xlu0 %631, %v538
    %v633 = vpop.permute.xlu0 %632
    %636 = vset.pattern.permute.xlu0 0
    %637 = vperm.xlu0 %636, %v539
    %v638 = vpop.permute.xlu0 %637
    %641 = vset.pattern.permute.xlu0 0
    %642 = vperm.xlu0 %641, %v540
    %v643 = vpop.permute.xlu0 %642
    %646 = vset.pattern.permute.xlu0 0
    %647 = vperm.xlu0 %646, %v541
    %v648 = vpop.permute.xlu0 %647
    %651 = vset.pattern.permute.xlu0 0
    %652 = vperm.xlu0 %651, %v542
    %v653 = vpop.permute.xlu0 %652
    %656 = vset.pattern.permute.xlu0 0
    %657 = vperm.xlu0 %656, %v543
    %v658 = vpop.permute.xlu0 %657
    %661 = vset.pattern.permute.xlu0 0
    %662 = vperm.xlu0 %661, %v544
    %v663 = vpop.permute.xlu0 %662
    %666 = vset.pattern.permute.xlu0 0
    %667 = vperm.xlu0 %666, %v545
    %v668 = vpop.permute.xlu0 %667
    %671 = vset.pattern.permute.xlu0 0
    %672 = vperm.xlu0 %671, %v546
    %v673 = vpop.permute.xlu0 %672
    %v675 = vsub.f32 %v435, %v598
    %v676 = vsub.f32 %v436, %v603
    %v677 = vsub.f32 %v437, %v608
    %v678 = vsub.f32 %v438, %v613
    %v679 = vsub.f32 %v439, %v618
    %v680 = vsub.f32 %v440, %v623
    %v681 = vsub.f32 %v441, %v628
    %v682 = vsub.f32 %v442, %v633
    %v683 = vsub.f32 %v443, %v638
    %v684 = vsub.f32 %v444, %v643
    %v685 = vsub.f32 %v445, %v648
    %v686 = vsub.f32 %v446, %v653
    %v687 = vsub.f32 %v447, %v658
    %v688 = vsub.f32 %v448, %v663
    %v689 = vsub.f32 %v449, %v668
    %v690 = vsub.f32 %v450, %v673
    %692 = vset.pattern.permute.xlu0 0
    %693 = vperm.xlu0 %692, %v579
    %v694 = vpop.permute.xlu0 %693
    %697 = vset.pattern.permute.xlu0 0
    %698 = vperm.xlu0 %697, %v580
    %v699 = vpop.permute.xlu0 %698
    %702 = vset.pattern.permute.xlu0 0
    %703 = vperm.xlu0 %702, %v581
    %v704 = vpop.permute.xlu0 %703
    %707 = vset.pattern.permute.xlu0 0
    %708 = vperm.xlu0 %707, %v582
    %v709 = vpop.permute.xlu0 %708
    %712 = vset.pattern.permute.xlu0 0
    %713 = vperm.xlu0 %712, %v583
    %v714 = vpop.permute.xlu0 %713
    %717 = vset.pattern.permute.xlu0 0
    %718 = vperm.xlu0 %717, %v584
    %v719 = vpop.permute.xlu0 %718
    %722 = vset.pattern.permute.xlu0 0
    %723 = vperm.xlu0 %722, %v585
    %v724 = vpop.permute.xlu0 %723
    %727 = vset.pattern.permute.xlu0 0
    %728 = vperm.xlu0 %727, %v586
    %v729 = vpop.permute.xlu0 %728
    %732 = vset.pattern.permute.xlu0 0
    %733 = vperm.xlu0 %732, %v587
    %v734 = vpop.permute.xlu0 %733
    %737 = vset.pattern.permute.xlu0 0
    %738 = vperm.xlu0 %737, %v588
    %v739 = vpop.permute.xlu0 %738
    %742 = vset.pattern.permute.xlu0 0
    %743 = vperm.xlu0 %742, %v589
    %v744 = vpop.permute.xlu0 %743
    %747 = vset.pattern.permute.xlu0 0
    %748 = vperm.xlu0 %747, %v590
    %v749 = vpop.permute.xlu0 %748
    %752 = vset.pattern.permute.xlu0 0
    %753 = vperm.xlu0 %752, %v591
    %v754 = vpop.permute.xlu0 %753
    %757 = vset.pattern.permute.xlu0 0
    %758 = vperm.xlu0 %757, %v592
    %v759 = vpop.permute.xlu0 %758
    %762 = vset.pattern.permute.xlu0 0
    %763 = vperm.xlu0 %762, %v593
    %v764 = vpop.permute.xlu0 %763
    %767 = vset.pattern.permute.xlu0 0
    %768 = vperm.xlu0 %767, %v594
    %v769 = vpop.permute.xlu0 %768
    %v771 = vsub.f32 %v451, %v694
    %v772 = vsub.f32 %v452, %v699
    %v773 = vsub.f32 %v453, %v704
    %v774 = vsub.f32 %v454, %v709
    %v775 = vsub.f32 %v455, %v714
    %v776 = vsub.f32 %v456, %v719
    %v777 = vsub.f32 %v457, %v724
    %v778 = vsub.f32 %v458, %v729
    %v779 = vsub.f32 %v459, %v734
    %v780 = vsub.f32 %v460, %v739
    %v781 = vsub.f32 %v461, %v744
    %v782 = vsub.f32 %v462, %v749
    %v783 = vsub.f32 %v463, %v754
    %v784 = vsub.f32 %v464, %v759
    %v785 = vsub.f32 %v465, %v764
    %v786 = vsub.f32 %v466, %v769
    %v787 = vsel %vm371, %v675, %v771
    %v788 = vsel %vm372, %v676, %v772
    %v789 = vsel %vm373, %v677, %v773
    %v790 = vsel %vm374, %v678, %v774
    %v791 = vsel %vm375, %v679, %v775
    %v792 = vsel %vm376, %v680, %v776
    %v793 = vsel %vm377, %v681, %v777
    %v794 = vsel %vm378, %v682, %v778
    %v795 = vsel %vm379, %v683, %v779
    %v796 = vsel %vm380, %v684, %v780
    %v797 = vsel %vm381, %v685, %v781
    %v798 = vsel %vm382, %v686, %v782
    %v799 = vsel %vm383, %v687, %v783
    %v800 = vsel %vm384, %v688, %v784
    %v801 = vsel %vm385, %v689, %v785
    %v802 = vsel %vm386, %v690, %v786
    %v803 = vmul.f32 %v787, 1.442695
    %v804 = vpow.pop %v803
    %v805 = vmul.f32 %v788, 1.442695
    %v806 = vpow.pop %v805
    %v807 = vmul.f32 %v789, 1.442695
    %v808 = vpow.pop %v807
    %v809 = vmul.f32 %v790, 1.442695
    %v810 = vpow.pop %v809
    %v811 = vmul.f32 %v791, 1.442695
    %v812 = vpow.pop %v811
    %v813 = vmul.f32 %v792, 1.442695
    %v814 = vpow.pop %v813
    %v815 = vmul.f32 %v793, 1.442695
    %v816 = vpow.pop %v815
    %v817 = vmul.f32 %v794, 1.442695
    %v818 = vpow.pop %v817
    %v819 = vmul.f32 %v795, 1.442695
    %v820 = vpow.pop %v819
    %v821 = vmul.f32 %v796, 1.442695
    %v822 = vpow.pop %v821
    %v823 = vmul.f32 %v797, 1.442695
    %v824 = vpow.pop %v823
    %v825 = vmul.f32 %v798, 1.442695
    %v826 = vpow.pop %v825
    %v827 = vmul.f32 %v799, 1.442695
    %v828 = vpow.pop %v827
    %v829 = vmul.f32 %v800, 1.442695
    %v830 = vpow.pop %v829
    %v831 = vmul.f32 %v801, 1.442695
    %v832 = vpow.pop %v831
    %v833 = vmul.f32 %v802, 1.442695
    %v834 = vpow.pop %v833
    %v835 = vld [vmem:[#allocation3] sm:$0xff]
    %v836 = vld [vmem:[#allocation3 + $0x8] sm:$0xff]
    %v837 = vld [vmem:[#allocation3 + $0x10] sm:$0xff]
    %v838 = vld [vmem:[#allocation3 + $0x18] sm:$0xff]
    %v839 = vld [vmem:[#allocation3 + $0x20] sm:$0xff]
    %v840 = vld [vmem:[#allocation3 + $0x28] sm:$0xff]
    %v841 = vld [vmem:[#allocation3 + $0x30] sm:$0xff]
    %v842 = vld [vmem:[#allocation3 + $0x38] sm:$0xff]
    %v843 = vld [vmem:[#allocation3 + $0x40] sm:$0xff]
    %v844 = vld [vmem:[#allocation3 + $0x48] sm:$0xff]
    %v845 = vld [vmem:[#allocation3 + $0x50] sm:$0xff]
    %v846 = vld [vmem:[#allocation3 + $0x58] sm:$0xff]
    %v847 = vld [vmem:[#allocation3 + $0x60] sm:$0xff]
    %v848 = vld [vmem:[#allocation3 + $0x68] sm:$0xff]
    %v849 = vld [vmem:[#allocation3 + $0x70] sm:$0xff]
    %v850 = vld [vmem:[#allocation3 + $0x78] sm:$0xff]
    %v851 = vsub.f32 %v467, %v531
    %v852 = vsub.f32 %v468, %v532
    %v853 = vsub.f32 %v469, %v533
    %v854 = vsub.f32 %v470, %v534
    %v855 = vsub.f32 %v471, %v535
    %v856 = vsub.f32 %v472, %v536
    %v857 = vsub.f32 %v473, %v537
    %v858 = vsub.f32 %v474, %v538
    %v859 = vsub.f32 %v475, %v539
    %v860 = vsub.f32 %v476, %v540
    %v861 = vsub.f32 %v477, %v541
    %v862 = vsub.f32 %v478, %v542
    %v863 = vsub.f32 %v479, %v543
    %v864 = vsub.f32 %v480, %v544
    %v865 = vsub.f32 %v481, %v545
    %v866 = vsub.f32 %v482, %v546
    %v867 = vmul.f32 %v851, 1.442695
    %v868 = vpow.pop %v867
    %v869 = vmul.f32 %v852, 1.442695
    %v870 = vpow.pop %v869
    %v871 = vmul.f32 %v853, 1.442695
    %v872 = vpow.pop %v871
    %v873 = vmul.f32 %v854, 1.442695
    %v874 = vpow.pop %v873
    %v875 = vmul.f32 %v855, 1.442695
    %v876 = vpow.pop %v875
    %v877 = vmul.f32 %v856, 1.442695
    %v878 = vpow.pop %v877
    %v879 = vmul.f32 %v857, 1.442695
    %v880 = vpow.pop %v879
    %v881 = vmul.f32 %v858, 1.442695
    %v882 = vpow.pop %v881
    %v883 = vmul.f32 %v859, 1.442695
    %v884 = vpow.pop %v883
    %v885 = vmul.f32 %v860, 1.442695
    %v886 = vpow.pop %v885
    %v887 = vmul.f32 %v861, 1.442695
    %v888 = vpow.pop %v887
    %v889 = vmul.f32 %v862, 1.442695
    %v890 = vpow.pop %v889
    %v891 = vmul.f32 %v863, 1.442695
    %v892 = vpow.pop %v891
    %v893 = vmul.f32 %v864, 1.442695
    %v894 = vpow.pop %v893
    %v895 = vmul.f32 %v865, 1.442695
    %v896 = vpow.pop %v895
    %v897 = vmul.f32 %v866, 1.442695
    %v898 = vpow.pop %v897
    %v899 = vmul.f32 %v835, %v868
    %v900 = vmul.f32 %v836, %v870
    %v901 = vmul.f32 %v837, %v872
    %v902 = vmul.f32 %v838, %v874
    %v903 = vmul.f32 %v839, %v876
    %v904 = vmul.f32 %v840, %v878
    %v905 = vmul.f32 %v841, %v880
    %v906 = vmul.f32 %v842, %v882
    %v907 = vmul.f32 %v843, %v884
    %v908 = vmul.f32 %v844, %v886
    %v909 = vmul.f32 %v845, %v888
    %v910 = vmul.f32 %v846, %v890
    %v911 = vmul.f32 %v847, %v892
    %v912 = vmul.f32 %v848, %v894
    %v913 = vmul.f32 %v849, %v896
    %v914 = vmul.f32 %v850, %v898
    %v915 = vsel %vm371, %v804, 0.0
    %v916 = vsel %vm372, %v806, 0.0
    %v917 = vsel %vm373, %v808, 0.0
    %v918 = vsel %vm374, %v810, 0.0
    %v919 = vsel %vm375, %v812, 0.0
    %v920 = vsel %vm376, %v814, 0.0
    %v921 = vsel %vm377, %v816, 0.0
    %v922 = vsel %vm378, %v818, 0.0
    %v923 = vsel %vm379, %v820, 0.0
    %v924 = vsel %vm380, %v822, 0.0
    %v925 = vsel %vm381, %v824, 0.0
    %v926 = vsel %vm382, %v826, 0.0
    %v927 = vsel %vm383, %v828, 0.0
    %v928 = vsel %vm384, %v830, 0.0
    %v929 = vsel %vm385, %v832, 0.0
    %v930 = vsel %vm386, %v834, 0.0
    %931 = vadd.xlane.f32.xlu0 %v915
    %v932 = vpop.xlane.xlu0 %931
    %933 = vadd.xlane.f32.xlu0 %v916
    %v934 = vpop.xlane.xlu0 %933
    %935 = vadd.xlane.f32.xlu0 %v917
    %v936 = vpop.xlane.xlu0 %935
    %937 = vadd.xlane.f32.xlu0 %v918
    %v938 = vpop.xlane.xlu0 %937
    %939 = vadd.xlane.f32.xlu0 %v919
    %v940 = vpop.xlane.xlu0 %939
    %941 = vadd.xlane.f32.xlu0 %v920
    %v942 = vpop.xlane.xlu0 %941
    %943 = vadd.xlane.f32.xlu0 %v921
    %v944 = vpop.xlane.xlu0 %943
    %945 = vadd.xlane.f32.xlu0 %v922
    %v946 = vpop.xlane.xlu0 %945
    %947 = vadd.xlane.f32.xlu0 %v923
    %v948 = vpop.xlane.xlu0 %947
    %949 = vadd.xlane.f32.xlu0 %v924
    %v950 = vpop.xlane.xlu0 %949
    %951 = vadd.xlane.f32.xlu0 %v925
    %v952 = vpop.xlane.xlu0 %951
    %953 = vadd.xlane.f32.xlu0 %v926
    %v954 = vpop.xlane.xlu0 %953
    %955 = vadd.xlane.f32.xlu0 %v927
    %v956 = vpop.xlane.xlu0 %955
    %957 = vadd.xlane.f32.xlu0 %v928
    %v958 = vpop.xlane.xlu0 %957
    %959 = vadd.xlane.f32.xlu0 %v929
    %v960 = vpop.xlane.xlu0 %959
    %961 = vadd.xlane.f32.xlu0 %v930
    %v962 = vpop.xlane.xlu0 %961
    %v963 = vadd.f32 %v899, %v932
    %v964 = vadd.f32 %v900, %v934
    %v965 = vadd.f32 %v901, %v936
    %v966 = vadd.f32 %v902, %v938
    %v967 = vadd.f32 %v903, %v940
    %v968 = vadd.f32 %v904, %v942
    %v969 = vadd.f32 %v905, %v944
    %v970 = vadd.f32 %v906, %v946
    %v971 = vadd.f32 %v907, %v948
    %v972 = vadd.f32 %v908, %v950
    %v973 = vadd.f32 %v909, %v952
    %v974 = vadd.f32 %v910, %v954
    %v975 = vadd.f32 %v911, %v956
    %v976 = vadd.f32 %v912, %v958
    %v977 = vadd.f32 %v913, %v960
    %v978 = vadd.f32 %v914, %v962
    %vm979 = vcmask 7168
    %980 = vst.msk [vmem:[#allocation3] sm:$0xff] %vm979, %v963
    %981 = vst.msk [vmem:[#allocation3 + $0x8] sm:$0xff] %vm979, %v964
    %982 = vst.msk [vmem:[#allocation3 + $0x10] sm:$0xff] %vm979, %v965
    %983 = vst.msk [vmem:[#allocation3 + $0x18] sm:$0xff] %vm979, %v966
    %984 = vst.msk [vmem:[#allocation3 + $0x20] sm:$0xff] %vm979, %v967
    %985 = vst.msk [vmem:[#allocation3 + $0x28] sm:$0xff] %vm979, %v968
    %986 = vst.msk [vmem:[#allocation3 + $0x30] sm:$0xff] %vm979, %v969
    %987 = vst.msk [vmem:[#allocation3 + $0x38] sm:$0xff] %vm979, %v970
    %988 = vst.msk [vmem:[#allocation3 + $0x40] sm:$0xff] %vm979, %v971
    %989 = vst.msk [vmem:[#allocation3 + $0x48] sm:$0xff] %vm979, %v972
    %990 = vst.msk [vmem:[#allocation3 + $0x50] sm:$0xff] %vm979, %v973
    %991 = vst.msk [vmem:[#allocation3 + $0x58] sm:$0xff] %vm979, %v974
    %992 = vst.msk [vmem:[#allocation3 + $0x60] sm:$0xff] %vm979, %v975
    %993 = vst.msk [vmem:[#allocation3 + $0x68] sm:$0xff] %vm979, %v976
    %994 = vst.msk [vmem:[#allocation3 + $0x70] sm:$0xff] %vm979, %v977
    %995 = vst.msk [vmem:[#allocation3 + $0x78] sm:$0xff] %vm979, %v978
    %v996 = vld [vmem:[#allocation5] sm:$0xff]
    %v997 = vld [vmem:[#allocation5 + $0x8] sm:$0xff]
    %v998 = vld [vmem:[#allocation5 + $0x10] sm:$0xff]
    %v999 = vld [vmem:[#allocation5 + $0x18] sm:$0xff]
    %v1000 = vld [vmem:[#allocation5 + $0x20] sm:$0xff]
    %v1001 = vld [vmem:[#allocation5 + $0x28] sm:$0xff]
    %v1002 = vld [vmem:[#allocation5 + $0x30] sm:$0xff]
    %v1003 = vld [vmem:[#allocation5 + $0x38] sm:$0xff]
    %v1004 = vld [vmem:[#allocation5 + $0x40] sm:$0xff]
    %v1005 = vld [vmem:[#allocation5 + $0x48] sm:$0xff]
    %v1006 = vld [vmem:[#allocation5 + $0x50] sm:$0xff]
    %v1007 = vld [vmem:[#allocation5 + $0x58] sm:$0xff]
    %v1008 = vld [vmem:[#allocation5 + $0x60] sm:$0xff]
    %v1009 = vld [vmem:[#allocation5 + $0x68] sm:$0xff]
    %v1010 = vld [vmem:[#allocation5 + $0x70] sm:$0xff]
    %v1011 = vld [vmem:[#allocation5 + $0x78] sm:$0xff]
    %v1012 = vsub.f32 %v483, %v579
    %v1013 = vsub.f32 %v484, %v580
    %v1014 = vsub.f32 %v485, %v581
    %v1015 = vsub.f32 %v486, %v582
    %v1016 = vsub.f32 %v487, %v583
    %v1017 = vsub.f32 %v488, %v584
    %v1018 = vsub.f32 %v489, %v585
    %v1019 = vsub.f32 %v490, %v586
    %v1020 = vsub.f32 %v491, %v587
    %v1021 = vsub.f32 %v492, %v588
    %v1022 = vsub.f32 %v493, %v589
    %v1023 = vsub.f32 %v494, %v590
    %v1024 = vsub.f32 %v495, %v591
    %v1025 = vsub.f32 %v496, %v592
    %v1026 = vsub.f32 %v497, %v593
    %v1027 = vsub.f32 %v498, %v594
    %v1028 = vmul.f32 %v1012, 1.442695
    %v1029 = vpow.pop %v1028
    %v1030 = vmul.f32 %v1013, 1.442695
    %v1031 = vpow.pop %v1030
    %v1032 = vmul.f32 %v1014, 1.442695
    %v1033 = vpow.pop %v1032
    %v1034 = vmul.f32 %v1015, 1.442695
    %v1035 = vpow.pop %v1034
    %v1036 = vmul.f32 %v1016, 1.442695
    %v1037 = vpow.pop %v1036
    %v1038 = vmul.f32 %v1017, 1.442695
    %v1039 = vpow.pop %v1038
    %v1040 = vmul.f32 %v1018, 1.442695
    %v1041 = vpow.pop %v1040
    %v1042 = vmul.f32 %v1019, 1.442695
    %v1043 = vpow.pop %v1042
    %v1044 = vmul.f32 %v1020, 1.442695
    %v1045 = vpow.pop %v1044
    %v1046 = vmul.f32 %v1021, 1.442695
    %v1047 = vpow.pop %v1046
    %v1048 = vmul.f32 %v1022, 1.442695
    %v1049 = vpow.pop %v1048
    %v1050 = vmul.f32 %v1023, 1.442695
    %v1051 = vpow.pop %v1050
    %v1052 = vmul.f32 %v1024, 1.442695
    %v1053 = vpow.pop %v1052
    %v1054 = vmul.f32 %v1025, 1.442695
    %v1055 = vpow.pop %v1054
    %v1056 = vmul.f32 %v1026, 1.442695
    %v1057 = vpow.pop %v1056
    %v1058 = vmul.f32 %v1027, 1.442695
    %v1059 = vpow.pop %v1058
    %v1060 = vmul.f32 %v996, %v1029
    %v1061 = vmul.f32 %v997, %v1031
    %v1062 = vmul.f32 %v998, %v1033
    %v1063 = vmul.f32 %v999, %v1035
    %v1064 = vmul.f32 %v1000, %v1037
    %v1065 = vmul.f32 %v1001, %v1039
    %v1066 = vmul.f32 %v1002, %v1041
    %v1067 = vmul.f32 %v1003, %v1043
    %v1068 = vmul.f32 %v1004, %v1045
    %v1069 = vmul.f32 %v1005, %v1047
    %v1070 = vmul.f32 %v1006, %v1049
    %v1071 = vmul.f32 %v1007, %v1051
    %v1072 = vmul.f32 %v1008, %v1053
    %v1073 = vmul.f32 %v1009, %v1055
    %v1074 = vmul.f32 %v1010, %v1057
    %v1075 = vmul.f32 %v1011, %v1059
    %v1076 = vsel %vm403, %v804, 0.0
    %v1077 = vsel %vm404, %v806, 0.0
    %v1078 = vsel %vm405, %v808, 0.0
    %v1079 = vsel %vm406, %v810, 0.0
    %v1080 = vsel %vm407, %v812, 0.0
    %v1081 = vsel %vm408, %v814, 0.0
    %v1082 = vsel %vm409, %v816, 0.0
    %v1083 = vsel %vm410, %v818, 0.0
    %v1084 = vsel %vm411, %v820, 0.0
    %v1085 = vsel %vm412, %v822, 0.0
    %v1086 = vsel %vm413, %v824, 0.0
    %v1087 = vsel %vm414, %v826, 0.0
    %v1088 = vsel %vm415, %v828, 0.0
    %v1089 = vsel %vm416, %v830, 0.0
    %v1090 = vsel %vm417, %v832, 0.0
    %v1091 = vsel %vm418, %v834, 0.0
    %1092 = vadd.xlane.f32.xlu0 %v1076
    %v1093 = vpop.xlane.xlu0 %1092
    %1094 = vadd.xlane.f32.xlu0 %v1077
    %v1095 = vpop.xlane.xlu0 %1094
    %1096 = vadd.xlane.f32.xlu0 %v1078
    %v1097 = vpop.xlane.xlu0 %1096
    %1098 = vadd.xlane.f32.xlu0 %v1079
    %v1099 = vpop.xlane.xlu0 %1098
    %1100 = vadd.xlane.f32.xlu0 %v1080
    %v1101 = vpop.xlane.xlu0 %1100
    %1102 = vadd.xlane.f32.xlu0 %v1081
    %v1103 = vpop.xlane.xlu0 %1102
    %1104 = vadd.xlane.f32.xlu0 %v1082
    %v1105 = vpop.xlane.xlu0 %1104
    %1106 = vadd.xlane.f32.xlu0 %v1083
    %v1107 = vpop.xlane.xlu0 %1106
    %1108 = vadd.xlane.f32.xlu0 %v1084
    %v1109 = vpop.xlane.xlu0 %1108
    %1110 = vadd.xlane.f32.xlu0 %v1085
    %v1111 = vpop.xlane.xlu0 %1110
    %1112 = vadd.xlane.f32.xlu0 %v1086
    %v1113 = vpop.xlane.xlu0 %1112
    %1114 = vadd.xlane.f32.xlu0 %v1087
    %v1115 = vpop.xlane.xlu0 %1114
    %1116 = vadd.xlane.f32.xlu0 %v1088
    %v1117 = vpop.xlane.xlu0 %1116
    %1118 = vadd.xlane.f32.xlu0 %v1089
    %v1119 = vpop.xlane.xlu0 %1118
    %1120 = vadd.xlane.f32.xlu0 %v1090
    %v1121 = vpop.xlane.xlu0 %1120
    %1122 = vadd.xlane.f32.xlu0 %v1091
    %v1123 = vpop.xlane.xlu0 %1122
    %v1124 = vadd.f32 %v1060, %v1093
    %v1125 = vadd.f32 %v1061, %v1095
    %v1126 = vadd.f32 %v1062, %v1097
    %v1127 = vadd.f32 %v1063, %v1099
    %v1128 = vadd.f32 %v1064, %v1101
    %v1129 = vadd.f32 %v1065, %v1103
    %v1130 = vadd.f32 %v1066, %v1105
    %v1131 = vadd.f32 %v1067, %v1107
    %v1132 = vadd.f32 %v1068, %v1109
    %v1133 = vadd.f32 %v1069, %v1111
    %v1134 = vadd.f32 %v1070, %v1113
    %v1135 = vadd.f32 %v1071, %v1115
    %v1136 = vadd.f32 %v1072, %v1117
    %v1137 = vadd.f32 %v1073, %v1119
    %v1138 = vadd.f32 %v1074, %v1121
    %v1139 = vadd.f32 %v1075, %v1123
    %1140 = vst.msk [vmem:[#allocation5] sm:$0xff] %vm979, %v1124
    %1141 = vst.msk [vmem:[#allocation5 + $0x8] sm:$0xff] %vm979, %v1125
    %1142 = vst.msk [vmem:[#allocation5 + $0x10] sm:$0xff] %vm979, %v1126
    %1143 = vst.msk [vmem:[#allocation5 + $0x18] sm:$0xff] %vm979, %v1127
    %1144 = vst.msk [vmem:[#allocation5 + $0x20] sm:$0xff] %vm979, %v1128
    %1145 = vst.msk [vmem:[#allocation5 + $0x28] sm:$0xff] %vm979, %v1129
    %1146 = vst.msk [vmem:[#allocation5 + $0x30] sm:$0xff] %vm979, %v1130
    %1147 = vst.msk [vmem:[#allocation5 + $0x38] sm:$0xff] %vm979, %v1131
    %1148 = vst.msk [vmem:[#allocation5 + $0x40] sm:$0xff] %vm979, %v1132
    %1149 = vst.msk [vmem:[#allocation5 + $0x48] sm:$0xff] %vm979, %v1133
    %1150 = vst.msk [vmem:[#allocation5 + $0x50] sm:$0xff] %vm979, %v1134
    %1151 = vst.msk [vmem:[#allocation5 + $0x58] sm:$0xff] %vm979, %v1135
    %1152 = vst.msk [vmem:[#allocation5 + $0x60] sm:$0xff] %vm979, %v1136
    %1153 = vst.msk [vmem:[#allocation5 + $0x68] sm:$0xff] %vm979, %v1137
    %1154 = vst.msk [vmem:[#allocation5 + $0x70] sm:$0xff] %vm979, %v1138
    %1155 = vst.msk [vmem:[#allocation5 + $0x78] sm:$0xff] %vm979, %v1139
    %1156 = vst.msk [vmem:[#allocation2] sm:$0xff] %vm979, %v531
    %1157 = vst.msk [vmem:[#allocation2 + $0x8] sm:$0xff] %vm979, %v532
    %1158 = vst.msk [vmem:[#allocation2 + $0x10] sm:$0xff] %vm979, %v533
    %1159 = vst.msk [vmem:[#allocation2 + $0x18] sm:$0xff] %vm979, %v534
    %1160 = vst.msk [vmem:[#allocation2 + $0x20] sm:$0xff] %vm979, %v535
    %1161 = vst.msk [vmem:[#allocation2 + $0x28] sm:$0xff] %vm979, %v536
    %1162 = vst.msk [vmem:[#allocation2 + $0x30] sm:$0xff] %vm979, %v537
    %1163 = vst.msk [vmem:[#allocation2 + $0x38] sm:$0xff] %vm979, %v538
    %1164 = vst.msk [vmem:[#allocation2 + $0x40] sm:$0xff] %vm979, %v539
    %1165 = vst.msk [vmem:[#allocation2 + $0x48] sm:$0xff] %vm979, %v540
    %1166 = vst.msk [vmem:[#allocation2 + $0x50] sm:$0xff] %vm979, %v541
    %1167 = vst.msk [vmem:[#allocation2 + $0x58] sm:$0xff] %vm979, %v542
    %1168 = vst.msk [vmem:[#allocation2 + $0x60] sm:$0xff] %vm979, %v543
    %1169 = vst.msk [vmem:[#allocation2 + $0x68] sm:$0xff] %vm979, %v544
    %1170 = vst.msk [vmem:[#allocation2 + $0x70] sm:$0xff] %vm979, %v545
    %1171 = vst.msk [vmem:[#allocation2 + $0x78] sm:$0xff] %vm979, %v546
    %1172 = vst.msk [vmem:[#allocation4] sm:$0xff] %vm979, %v579
    %1173 = vst.msk [vmem:[#allocation4 + $0x8] sm:$0xff] %vm979, %v580
    %1174 = vst.msk [vmem:[#allocation4 + $0x10] sm:$0xff] %vm979, %v581
    %1175 = vst.msk [vmem:[#allocation4 + $0x18] sm:$0xff] %vm979, %v582
    %1176 = vst.msk [vmem:[#allocation4 + $0x20] sm:$0xff] %vm979, %v583
    %1177 = vst.msk [vmem:[#allocation4 + $0x28] sm:$0xff] %vm979, %v584
    %1178 = vst.msk [vmem:[#allocation4 + $0x30] sm:$0xff] %vm979, %v585
    %1179 = vst.msk [vmem:[#allocation4 + $0x38] sm:$0xff] %vm979, %v586
    %1180 = vst.msk [vmem:[#allocation4 + $0x40] sm:$0xff] %vm979, %v587
    %1181 = vst.msk [vmem:[#allocation4 + $0x48] sm:$0xff] %vm979, %v588
    %1182 = vst.msk [vmem:[#allocation4 + $0x50] sm:$0xff] %vm979, %v589
    %1183 = vst.msk [vmem:[#allocation4 + $0x58] sm:$0xff] %vm979, %v590
    %1184 = vst.msk [vmem:[#allocation4 + $0x60] sm:$0xff] %vm979, %v591
    %1185 = vst.msk [vmem:[#allocation4 + $0x68] sm:$0xff] %vm979, %v592
    %1186 = vst.msk [vmem:[#allocation4 + $0x70] sm:$0xff] %vm979, %v593
    %1187 = vst.msk [vmem:[#allocation4 + $0x78] sm:$0xff] %vm979, %v594
    // Predicated region
    $region26: #{tpu_custom_call.1} parent=1 // pred_check
      %p1188 = pneg %p32
    $region27: #{tpu_custom_call.1} parent=1 // pred_check_branch
      %1190 = sbr.rel (%p1188) target = $region29
    $region28: #{tpu_custom_call.1} parent=1 // pred_region
      %v1191 = vld [vmem:[#allocation2] sm:$0xff]
      %v1192 = vld [vmem:[#allocation2 + $0x8] sm:$0xff]
      %v1193 = vld [vmem:[#allocation2 + $0x10] sm:$0xff]
      %v1194 = vld [vmem:[#allocation2 + $0x18] sm:$0xff]
      %v1195 = vld [vmem:[#allocation2 + $0x20] sm:$0xff]
      %v1196 = vld [vmem:[#allocation2 + $0x28] sm:$0xff]
      %v1197 = vld [vmem:[#allocation2 + $0x30] sm:$0xff]
      %v1198 = vld [vmem:[#allocation2 + $0x38] sm:$0xff]
      %v1199 = vld [vmem:[#allocation2 + $0x40] sm:$0xff]
      %v1200 = vld [vmem:[#allocation2 + $0x48] sm:$0xff]
      %v1201 = vld [vmem:[#allocation2 + $0x50] sm:$0xff]
      %v1202 = vld [vmem:[#allocation2 + $0x58] sm:$0xff]
      %v1203 = vld [vmem:[#allocation2 + $0x60] sm:$0xff]
      %v1204 = vld [vmem:[#allocation2 + $0x68] sm:$0xff]
      %v1205 = vld [vmem:[#allocation2 + $0x70] sm:$0xff]
      %v1206 = vld [vmem:[#allocation2 + $0x78] sm:$0xff]
      %v1207 = vld [vmem:[#allocation3] sm:$0xff]
      %v1208 = vld [vmem:[#allocation3 + $0x8] sm:$0xff]
      %v1209 = vld [vmem:[#allocation3 + $0x10] sm:$0xff]
      %v1210 = vld [vmem:[#allocation3 + $0x18] sm:$0xff]
      %v1211 = vld [vmem:[#allocation3 + $0x20] sm:$0xff]
      %v1212 = vld [vmem:[#allocation3 + $0x28] sm:$0xff]
      %v1213 = vld [vmem:[#allocation3 + $0x30] sm:$0xff]
      %v1214 = vld [vmem:[#allocation3 + $0x38] sm:$0xff]
      %v1215 = vld [vmem:[#allocation3 + $0x40] sm:$0xff]
      %v1216 = vld [vmem:[#allocation3 + $0x48] sm:$0xff]
      %v1217 = vld [vmem:[#allocation3 + $0x50] sm:$0xff]
      %v1218 = vld [vmem:[#allocation3 + $0x58] sm:$0xff]
      %v1219 = vld [vmem:[#allocation3 + $0x60] sm:$0xff]
      %v1220 = vld [vmem:[#allocation3 + $0x68] sm:$0xff]
      %v1221 = vld [vmem:[#allocation3 + $0x70] sm:$0xff]
      %v1222 = vld [vmem:[#allocation3 + $0x78] sm:$0xff]
      %v1223 = vlog2.pop %v1207
      %v1224 = vmul.f32 %v1223, 0.6931472
      %v1225 = vlog2.pop %v1208
      %v1226 = vmul.f32 %v1225, 0.6931472
      %v1227 = vlog2.pop %v1209
      %v1228 = vmul.f32 %v1227, 0.6931472
      %v1229 = vlog2.pop %v1210
      %v1230 = vmul.f32 %v1229, 0.6931472
      %v1231 = vlog2.pop %v1211
      %v1232 = vmul.f32 %v1231, 0.6931472
      %v1233 = vlog2.pop %v1212
      %v1234 = vmul.f32 %v1233, 0.6931472
      %v1235 = vlog2.pop %v1213
      %v1236 = vmul.f32 %v1235, 0.6931472
      %v1237 = vlog2.pop %v1214
      %v1238 = vmul.f32 %v1237, 0.6931472
      %v1239 = vlog2.pop %v1215
      %v1240 = vmul.f32 %v1239, 0.6931472
      %v1241 = vlog2.pop %v1216
      %v1242 = vmul.f32 %v1241, 0.6931472
      %v1243 = vlog2.pop %v1217
      %v1244 = vmul.f32 %v1243, 0.6931472
      %v1245 = vlog2.pop %v1218
      %v1246 = vmul.f32 %v1245, 0.6931472
      %v1247 = vlog2.pop %v1219
      %v1248 = vmul.f32 %v1247, 0.6931472
      %v1249 = vlog2.pop %v1220
      %v1250 = vmul.f32 %v1249, 0.6931472
      %v1251 = vlog2.pop %v1221
      %v1252 = vmul.f32 %v1251, 0.6931472
      %v1253 = vlog2.pop %v1222
      %v1254 = vmul.f32 %v1253, 0.6931472
      %v1255 = vadd.f32 %v1191, %v1224
      %v1256 = vadd.f32 %v1192, %v1226
      %v1257 = vadd.f32 %v1193, %v1228
      %v1258 = vadd.f32 %v1194, %v1230
      %v1259 = vadd.f32 %v1195, %v1232
      %v1260 = vadd.f32 %v1196, %v1234
      %v1261 = vadd.f32 %v1197, %v1236
      %v1262 = vadd.f32 %v1198, %v1238
      %v1263 = vadd.f32 %v1199, %v1240
      %v1264 = vadd.f32 %v1200, %v1242
      %v1265 = vadd.f32 %v1201, %v1244
      %v1266 = vadd.f32 %v1202, %v1246
      %v1267 = vadd.f32 %v1203, %v1248
      %v1268 = vadd.f32 %v1204, %v1250
      %v1269 = vadd.f32 %v1205, %v1252
      %v1270 = vadd.f32 %v1206, %v1254
      %v1271 = vld [vmem:[#allocation4] sm:$0xff]
      %v1272 = vld [vmem:[#allocation4 + $0x8] sm:$0xff]
      %v1273 = vld [vmem:[#allocation4 + $0x10] sm:$0xff]
      %v1274 = vld [vmem:[#allocation4 + $0x18] sm:$0xff]
      %v1275 = vld [vmem:[#allocation4 + $0x20] sm:$0xff]
      %v1276 = vld [vmem:[#allocation4 + $0x28] sm:$0xff]
      %v1277 = vld [vmem:[#allocation4 + $0x30] sm:$0xff]
      %v1278 = vld [vmem:[#allocation4 + $0x38] sm:$0xff]
      %v1279 = vld [vmem:[#allocation4 + $0x40] sm:$0xff]
      %v1280 = vld [vmem:[#allocation4 + $0x48] sm:$0xff]
      %v1281 = vld [vmem:[#allocation4 + $0x50] sm:$0xff]
      %v1282 = vld [vmem:[#allocation4 + $0x58] sm:$0xff]
      %v1283 = vld [vmem:[#allocation4 + $0x60] sm:$0xff]
      %v1284 = vld [vmem:[#allocation4 + $0x68] sm:$0xff]
      %v1285 = vld [vmem:[#allocation4 + $0x70] sm:$0xff]
      %v1286 = vld [vmem:[#allocation4 + $0x78] sm:$0xff]
      %v1287 = vld [vmem:[#allocation5] sm:$0xff]
      %v1288 = vld [vmem:[#allocation5 + $0x8] sm:$0xff]
      %v1289 = vld [vmem:[#allocation5 + $0x10] sm:$0xff]
      %v1290 = vld [vmem:[#allocation5 + $0x18] sm:$0xff]
      %v1291 = vld [vmem:[#allocation5 + $0x20] sm:$0xff]
      %v1292 = vld [vmem:[#allocation5 + $0x28] sm:$0xff]
      %v1293 = vld [vmem:[#allocation5 + $0x30] sm:$0xff]
      %v1294 = vld [vmem:[#allocation5 + $0x38] sm:$0xff]
      %v1295 = vld [vmem:[#allocation5 + $0x40] sm:$0xff]
      %v1296 = vld [vmem:[#allocation5 + $0x48] sm:$0xff]
      %v1297 = vld [vmem:[#allocation5 + $0x50] sm:$0xff]
      %v1298 = vld [vmem:[#allocation5 + $0x58] sm:$0xff]
      %v1299 = vld [vmem:[#allocation5 + $0x60] sm:$0xff]
      %v1300 = vld [vmem:[#allocation5 + $0x68] sm:$0xff]
      %v1301 = vld [vmem:[#allocation5 + $0x70] sm:$0xff]
      %v1302 = vld [vmem:[#allocation5 + $0x78] sm:$0xff]
      %v1303 = vlog2.pop %v1287
      %v1304 = vmul.f32 %v1303, 0.6931472
      %v1305 = vlog2.pop %v1288
      %v1306 = vmul.f32 %v1305, 0.6931472
      %v1307 = vlog2.pop %v1289
      %v1308 = vmul.f32 %v1307, 0.6931472
      %v1309 = vlog2.pop %v1290
      %v1310 = vmul.f32 %v1309, 0.6931472
      %v1311 = vlog2.pop %v1291
      %v1312 = vmul.f32 %v1311, 0.6931472
      %v1313 = vlog2.pop %v1292
      %v1314 = vmul.f32 %v1313, 0.6931472
      %v1315 = vlog2.pop %v1293
      %v1316 = vmul.f32 %v1315, 0.6931472
      %v1317 = vlog2.pop %v1294
      %v1318 = vmul.f32 %v1317, 0.6931472
      %v1319 = vlog2.pop %v1295
      %v1320 = vmul.f32 %v1319, 0.6931472
      %v1321 = vlog2.pop %v1296
      %v1322 = vmul.f32 %v1321, 0.6931472
      %v1323 = vlog2.pop %v1297
      %v1324 = vmul.f32 %v1323, 0.6931472
      %v1325 = vlog2.pop %v1298
      %v1326 = vmul.f32 %v1325, 0.6931472
      %v1327 = vlog2.pop %v1299
      %v1328 = vmul.f32 %v1327, 0.6931472
      %v1329 = vlog2.pop %v1300
      %v1330 = vmul.f32 %v1329, 0.6931472
      %v1331 = vlog2.pop %v1301
      %v1332 = vmul.f32 %v1331, 0.6931472
      %v1333 = vlog2.pop %v1302
      %v1334 = vmul.f32 %v1333, 0.6931472
      %v1335 = vadd.f32 %v1271, %v1304
      %v1336 = vadd.f32 %v1272, %v1306
      %v1337 = vadd.f32 %v1273, %v1308
      %v1338 = vadd.f32 %v1274, %v1310
      %v1339 = vadd.f32 %v1275, %v1312
      %v1340 = vadd.f32 %v1276, %v1314
      %v1341 = vadd.f32 %v1277, %v1316
      %v1342 = vadd.f32 %v1278, %v1318
      %v1343 = vadd.f32 %v1279, %v1320
      %v1344 = vadd.f32 %v1280, %v1322
      %v1345 = vadd.f32 %v1281, %v1324
      %v1346 = vadd.f32 %v1282, %v1326
      %v1347 = vadd.f32 %v1283, %v1328
      %v1348 = vadd.f32 %v1284, %v1330
      %v1349 = vadd.f32 %v1285, %v1332
      %v1350 = vadd.f32 %v1286, %v1334
      %v1351 = vadd.f32 %v1255, %v1335
      %v1352 = vadd.f32 %v1256, %v1336
      %v1353 = vadd.f32 %v1257, %v1337
      %v1354 = vadd.f32 %v1258, %v1338
      %v1355 = vadd.f32 %v1259, %v1339
      %v1356 = vadd.f32 %v1260, %v1340
      %v1357 = vadd.f32 %v1261, %v1341
      %v1358 = vadd.f32 %v1262, %v1342
      %v1359 = vadd.f32 %v1263, %v1343
      %v1360 = vadd.f32 %v1264, %v1344
      %v1361 = vadd.f32 %v1265, %v1345
      %v1362 = vadd.f32 %v1266, %v1346
      %v1363 = vadd.f32 %v1267, %v1347
      %v1364 = vadd.f32 %v1268, %v1348
      %v1365 = vadd.f32 %v1269, %v1349
      %v1366 = vadd.f32 %v1270, %v1350
      %v1367 = vmax.f32 %v1351, 0.0
      %v1368 = vmax.f32 %v1352, 0.0
      %v1369 = vmax.f32 %v1353, 0.0
      %v1370 = vmax.f32 %v1354, 0.0
      %v1371 = vmax.f32 %v1355, 0.0
      %v1372 = vmax.f32 %v1356, 0.0
      %v1373 = vmax.f32 %v1357, 0.0
      %v1374 = vmax.f32 %v1358, 0.0
      %v1375 = vmax.f32 %v1359, 0.0
      %v1376 = vmax.f32 %v1360, 0.0
      %v1377 = vmax.f32 %v1361, 0.0
      %v1378 = vmax.f32 %v1362, 0.0
      %v1379 = vmax.f32 %v1363, 0.0
      %v1380 = vmax.f32 %v1364, 0.0
      %v1381 = vmax.f32 %v1365, 0.0
      %v1382 = vmax.f32 %v1366, 0.0
      %v1383 = vand.u32 2147483647, %v1351
      %v1384 = vand.u32 2147483647, %v1352
      %v1385 = vand.u32 2147483647, %v1353
      %v1386 = vand.u32 2147483647, %v1354
      %v1387 = vand.u32 2147483647, %v1355
      %v1388 = vand.u32 2147483647, %v1356
      %v1389 = vand.u32 2147483647, %v1357
      %v1390 = vand.u32 2147483647, %v1358
      %v1391 = vand.u32 2147483647, %v1359
      %v1392 = vand.u32 2147483647, %v1360
      %v1393 = vand.u32 2147483647, %v1361
      %v1394 = vand.u32 2147483647, %v1362
      %v1395 = vand.u32 2147483647, %v1363
      %v1396 = vand.u32 2147483647, %v1364
      %v1397 = vand.u32 2147483647, %v1365
      %v1398 = vand.u32 2147483647, %v1366
      %v1399 = vsub.f32 0.0, %v1383
      %v1400 = vsub.f32 0.0, %v1384
      %v1401 = vsub.f32 0.0, %v1385
      %v1402 = vsub.f32 0.0, %v1386
      %v1403 = vsub.f32 0.0, %v1387
      %v1404 = vsub.f32 0.0, %v1388
      %v1405 = vsub.f32 0.0, %v1389
      %v1406 = vsub.f32 0.0, %v1390
      %v1407 = vsub.f32 0.0, %v1391
      %v1408 = vsub.f32 0.0, %v1392
      %v1409 = vsub.f32 0.0, %v1393
      %v1410 = vsub.f32 0.0, %v1394
      %v1411 = vsub.f32 0.0, %v1395
      %v1412 = vsub.f32 0.0, %v1396
      %v1413 = vsub.f32 0.0, %v1397
      %v1414 = vsub.f32 0.0, %v1398
      %v1415 = vmul.f32 %v1399, 1.442695
      %v1416 = vpow.pop %v1415
      %v1417 = vmul.f32 %v1400, 1.442695
      %v1418 = vpow.pop %v1417
      %v1419 = vmul.f32 %v1401, 1.442695
      %v1420 = vpow.pop %v1419
      %v1421 = vmul.f32 %v1402, 1.442695
      %v1422 = vpow.pop %v1421
      %v1423 = vmul.f32 %v1403, 1.442695
      %v1424 = vpow.pop %v1423
      %v1425 = vmul.f32 %v1404, 1.442695
      %v1426 = vpow.pop %v1425
      %v1427 = vmul.f32 %v1405, 1.442695
      %v1428 = vpow.pop %v1427
      %v1429 = vmul.f32 %v1406, 1.442695
      %v1430 = vpow.pop %v1429
      %v1431 = vmul.f32 %v1407, 1.442695
      %v1432 = vpow.pop %v1431
      %v1433 = vmul.f32 %v1408, 1.442695
      %v1434 = vpow.pop %v1433
      %v1435 = vmul.f32 %v1409, 1.442695
      %v1436 = vpow.pop %v1435
      %v1437 = vmul.f32 %v1410, 1.442695
      %v1438 = vpow.pop %v1437
      %v1439 = vmul.f32 %v1411, 1.442695
      %v1440 = vpow.pop %v1439
      %v1441 = vmul.f32 %v1412, 1.442695
      %v1442 = vpow.pop %v1441
      %v1443 = vmul.f32 %v1413, 1.442695
      %v1444 = vpow.pop %v1443
      %v1445 = vmul.f32 %v1414, 1.442695
      %v1446 = vpow.pop %v1445
      %v1447 = vadd.f32 %v1416, 1.0
      %v1448 = vlog2.pop %v1447
      %v1449 = vmul.f32 %v1448, 0.6931472
      %v1450 = vmul.f32 -0.5, %v1416
      %v1451 = vadd.f32 %v1450, 1.0
      %v1452 = vmul.f32 %v1451, %v1416
      %v1453 = vand.u32 2147483647, %v1416
      %vm1454 = vcmp.lt.f32.partialorder %v1453, 0.0004427343
      %v1455 = vsel %vm1454, %v1452, %v1449
      %v1456 = vadd.f32 %v1418, 1.0
      %v1457 = vlog2.pop %v1456
      %v1458 = vmul.f32 %v1457, 0.6931472
      %v1459 = vmul.f32 -0.5, %v1418
      %v1460 = vadd.f32 %v1459, 1.0
      %v1461 = vmul.f32 %v1460, %v1418
      %v1462 = vand.u32 2147483647, %v1418
      %vm1463 = vcmp.lt.f32.partialorder %v1462, 0.0004427343
      %v1464 = vsel %vm1463, %v1461, %v1458
      %v1465 = vadd.f32 %v1420, 1.0
      %v1466 = vlog2.pop %v1465
      %v1467 = vmul.f32 %v1466, 0.6931472
      %v1468 = vmul.f32 -0.5, %v1420
      %v1469 = vadd.f32 %v1468, 1.0
      %v1470 = vmul.f32 %v1469, %v1420
      %v1471 = vand.u32 2147483647, %v1420
      %vm1472 = vcmp.lt.f32.partialorder %v1471, 0.0004427343
      %v1473 = vsel %vm1472, %v1470, %v1467
      %v1474 = vadd.f32 %v1422, 1.0
      %v1475 = vlog2.pop %v1474
      %v1476 = vmul.f32 %v1475, 0.6931472
      %v1477 = vmul.f32 -0.5, %v1422
      %v1478 = vadd.f32 %v1477, 1.0
      %v1479 = vmul.f32 %v1478, %v1422
      %v1480 = vand.u32 2147483647, %v1422
      %vm1481 = vcmp.lt.f32.partialorder %v1480, 0.0004427343
      %v1482 = vsel %vm1481, %v1479, %v1476
      %v1483 = vadd.f32 %v1424, 1.0
      %v1484 = vlog2.pop %v1483
      %v1485 = vmul.f32 %v1484, 0.6931472
      %v1486 = vmul.f32 -0.5, %v1424
      %v1487 = vadd.f32 %v1486, 1.0
      %v1488 = vmul.f32 %v1487, %v1424
      %v1489 = vand.u32 2147483647, %v1424
      %vm1490 = vcmp.lt.f32.partialorder %v1489, 0.0004427343
      %v1491 = vsel %vm1490, %v1488, %v1485
      %v1492 = vadd.f32 %v1426, 1.0
      %v1493 = vlog2.pop %v1492
      %v1494 = vmul.f32 %v1493, 0.6931472
      %v1495 = vmul.f32 -0.5, %v1426
      %v1496 = vadd.f32 %v1495, 1.0
      %v1497 = vmul.f32 %v1496, %v1426
      %v1498 = vand.u32 2147483647, %v1426
      %vm1499 = vcmp.lt.f32.partialorder %v1498, 0.0004427343
      %v1500 = vsel %vm1499, %v1497, %v1494
      %v1501 = vadd.f32 %v1428, 1.0
      %v1502 = vlog2.pop %v1501
      %v1503 = vmul.f32 %v1502, 0.6931472
      %v1504 = vmul.f32 -0.5, %v1428
      %v1505 = vadd.f32 %v1504, 1.0
      %v1506 = vmul.f32 %v1505, %v1428
      %v1507 = vand.u32 2147483647, %v1428
      %vm1508 = vcmp.lt.f32.partialorder %v1507, 0.0004427343
      %v1509 = vsel %vm1508, %v1506, %v1503
      %v1510 = vadd.f32 %v1430, 1.0
      %v1511 = vlog2.pop %v1510
      %v1512 = vmul.f32 %v1511, 0.6931472
      %v1513 = vmul.f32 -0.5, %v1430
      %v1514 = vadd.f32 %v1513, 1.0
      %v1515 = vmul.f32 %v1514, %v1430
      %v1516 = vand.u32 2147483647, %v1430
      %vm1517 = vcmp.lt.f32.partialorder %v1516, 0.0004427343
      %v1518 = vsel %vm1517, %v1515, %v1512
      %v1519 = vadd.f32 %v1432, 1.0
      %v1520 = vlog2.pop %v1519
      %v1521 = vmul.f32 %v1520, 0.6931472
      %v1522 = vmul.f32 -0.5, %v1432
      %v1523 = vadd.f32 %v1522, 1.0
      %v1524 = vmul.f32 %v1523, %v1432
      %v1525 = vand.u32 2147483647, %v1432
      %vm1526 = vcmp.lt.f32.partialorder %v1525, 0.0004427343
      %v1527 = vsel %vm1526, %v1524, %v1521
      %v1528 = vadd.f32 %v1434, 1.0
      %v1529 = vlog2.pop %v1528
      %v1530 = vmul.f32 %v1529, 0.6931472
      %v1531 = vmul.f32 -0.5, %v1434
      %v1532 = vadd.f32 %v1531, 1.0
      %v1533 = vmul.f32 %v1532, %v1434
      %v1534 = vand.u32 2147483647, %v1434
      %vm1535 = vcmp.lt.f32.partialorder %v1534, 0.0004427343
      %v1536 = vsel %vm1535, %v1533, %v1530
      %v1537 = vadd.f32 %v1436, 1.0
      %v1538 = vlog2.pop %v1537
      %v1539 = vmul.f32 %v1538, 0.6931472
      %v1540 = vmul.f32 -0.5, %v1436
      %v1541 = vadd.f32 %v1540, 1.0
      %v1542 = vmul.f32 %v1541, %v1436
      %v1543 = vand.u32 2147483647, %v1436
      %vm1544 = vcmp.lt.f32.partialorder %v1543, 0.0004427343
      %v1545 = vsel %vm1544, %v1542, %v1539
      %v1546 = vadd.f32 %v1438, 1.0
      %v1547 = vlog2.pop %v1546
      %v1548 = vmul.f32 %v1547, 0.6931472
      %v1549 = vmul.f32 -0.5, %v1438
      %v1550 = vadd.f32 %v1549, 1.0
      %v1551 = vmul.f32 %v1550, %v1438
      %v1552 = vand.u32 2147483647, %v1438
      %vm1553 = vcmp.lt.f32.partialorder %v1552, 0.0004427343
      %v1554 = vsel %vm1553, %v1551, %v1548
      %v1555 = vadd.f32 %v1440, 1.0
      %v1556 = vlog2.pop %v1555
      %v1557 = vmul.f32 %v1556, 0.6931472
      %v1558 = vmul.f32 -0.5, %v1440
      %v1559 = vadd.f32 %v1558, 1.0
      %v1560 = vmul.f32 %v1559, %v1440
      %v1561 = vand.u32 2147483647, %v1440
      %vm1562 = vcmp.lt.f32.partialorder %v1561, 0.0004427343
      %v1563 = vsel %vm1562, %v1560, %v1557
      %v1564 = vadd.f32 %v1442, 1.0
      %v1565 = vlog2.pop %v1564
      %v1566 = vmul.f32 %v1565, 0.6931472
      %v1567 = vmul.f32 -0.5, %v1442
      %v1568 = vadd.f32 %v1567, 1.0
      %v1569 = vmul.f32 %v1568, %v1442
      %v1570 = vand.u32 2147483647, %v1442
      %vm1571 = vcmp.lt.f32.partialorder %v1570, 0.0004427343
      %v1572 = vsel %vm1571, %v1569, %v1566
      %v1573 = vadd.f32 %v1444, 1.0
      %v1574 = vlog2.pop %v1573
      %v1575 = vmul.f32 %v1574, 0.6931472
      %v1576 = vmul.f32 -0.5, %v1444
      %v1577 = vadd.f32 %v1576, 1.0
      %v1578 = vmul.f32 %v1577, %v1444
      %v1579 = vand.u32 2147483647, %v1444
      %vm1580 = vcmp.lt.f32.partialorder %v1579, 0.0004427343
      %v1581 = vsel %vm1580, %v1578, %v1575
      %v1582 = vadd.f32 %v1446, 1.0
      %v1583 = vlog2.pop %v1582
      %v1584 = vmul.f32 %v1583, 0.6931472
      %v1585 = vmul.f32 -0.5, %v1446
      %v1586 = vadd.f32 %v1585, 1.0
      %v1587 = vmul.f32 %v1586, %v1446
      %v1588 = vand.u32 2147483647, %v1446
      %vm1589 = vcmp.lt.f32.partialorder %v1588, 0.0004427343
      %v1590 = vsel %vm1589, %v1587, %v1584
      %v1591 = vadd.f32 %v1367, %v1455
      %v1592 = vadd.f32 %v1368, %v1464
      %v1593 = vadd.f32 %v1369, %v1473
      %v1594 = vadd.f32 %v1370, %v1482
      %v1595 = vadd.f32 %v1371, %v1491
      %v1596 = vadd.f32 %v1372, %v1500
      %v1597 = vadd.f32 %v1373, %v1509
      %v1598 = vadd.f32 %v1374, %v1518
      %v1599 = vadd.f32 %v1375, %v1527
      %v1600 = vadd.f32 %v1376, %v1536
      %v1601 = vadd.f32 %v1377, %v1545
      %v1602 = vadd.f32 %v1378, %v1554
      %v1603 = vadd.f32 %v1379, %v1563
      %v1604 = vadd.f32 %v1380, %v1572
      %v1605 = vadd.f32 %v1381, %v1581
      %v1606 = vadd.f32 %v1382, %v1590
      %1608 = vset.pattern.permute.xlu0 0
      %1609 = vperm.xlu0 %1608, %v1591
      %v1610 = vpop.permute.xlu0 %1609
      %1613 = vset.pattern.permute.xlu0 0
      %1614 = vperm.xlu0 %1613, %v1592
      %v1615 = vpop.permute.xlu0 %1614
      %1618 = vset.pattern.permute.xlu0 0
      %1619 = vperm.xlu0 %1618, %v1593
      %v1620 = vpop.permute.xlu0 %1619
      %1623 = vset.pattern.permute.xlu0 0
      %1624 = vperm.xlu0 %1623, %v1594
      %v1625 = vpop.permute.xlu0 %1624
      %1628 = vset.pattern.permute.xlu0 0
      %1629 = vperm.xlu0 %1628, %v1595
      %v1630 = vpop.permute.xlu0 %1629
      %1633 = vset.pattern.permute.xlu0 0
      %1634 = vperm.xlu0 %1633, %v1596
      %v1635 = vpop.permute.xlu0 %1634
      %1638 = vset.pattern.permute.xlu0 0
      %1639 = vperm.xlu0 %1638, %v1597
      %v1640 = vpop.permute.xlu0 %1639
      %1643 = vset.pattern.permute.xlu0 0
      %1644 = vperm.xlu0 %1643, %v1598
      %v1645 = vpop.permute.xlu0 %1644
      %1648 = vset.pattern.permute.xlu0 0
      %1649 = vperm.xlu0 %1648, %v1599
      %v1650 = vpop.permute.xlu0 %1649
      %1653 = vset.pattern.permute.xlu0 0
      %1654 = vperm.xlu0 %1653, %v1600
      %v1655 = vpop.permute.xlu0 %1654
      %1658 = vset.pattern.permute.xlu0 0
      %1659 = vperm.xlu0 %1658, %v1601
      %v1660 = vpop.permute.xlu0 %1659
      %1663 = vset.pattern.permute.xlu0 0
      %1664 = vperm.xlu0 %1663, %v1602
      %v1665 = vpop.permute.xlu0 %1664
      %1668 = vset.pattern.permute.xlu0 0
      %1669 = vperm.xlu0 %1668, %v1603
      %v1670 = vpop.permute.xlu0 %1669
      %1673 = vset.pattern.permute.xlu0 0
      %1674 = vperm.xlu0 %1673, %v1604
      %v1675 = vpop.permute.xlu0 %1674
      %1678 = vset.pattern.permute.xlu0 0
      %1679 = vperm.xlu0 %1678, %v1605
      %v1680 = vpop.permute.xlu0 %1679
      %1683 = vset.pattern.permute.xlu0 0
      %1684 = vperm.xlu0 %1683, %v1606
      %v1685 = vpop.permute.xlu0 %1684
      %1687 = vst [vmem:[#allocation9] sm:$0xff] %v1610
      %1688 = vst [vmem:[#allocation9 + $0x8] sm:$0xff] %v1615
      %1689 = vst [vmem:[#allocation9 + $0x10] sm:$0xff] %v1620
      %1690 = vst [vmem:[#allocation9 + $0x18] sm:$0xff] %v1625
      %1691 = vst [vmem:[#allocation9 + $0x20] sm:$0xff] %v1630
      %1692 = vst [vmem:[#allocation9 + $0x28] sm:$0xff] %v1635
      %1693 = vst [vmem:[#allocation9 + $0x30] sm:$0xff] %v1640
      %1694 = vst [vmem:[#allocation9 + $0x38] sm:$0xff] %v1645
      %1695 = vst [vmem:[#allocation9 + $0x40] sm:$0xff] %v1650
      %1696 = vst [vmem:[#allocation9 + $0x48] sm:$0xff] %v1655
      %1697 = vst [vmem:[#allocation9 + $0x50] sm:$0xff] %v1660
      %1698 = vst [vmem:[#allocation9 + $0x58] sm:$0xff] %v1665
      %1699 = vst [vmem:[#allocation9 + $0x60] sm:$0xff] %v1670
      %1700 = vst [vmem:[#allocation9 + $0x68] sm:$0xff] %v1675
      %1701 = vst [vmem:[#allocation9 + $0x70] sm:$0xff] %v1680
      %1702 = vst [vmem:[#allocation9 + $0x78] sm:$0xff] %v1685
    $region29: #{tpu_custom_call.1} parent=1 // pred_fallthru
      _
    // Predicated region
    $region30: #{tpu_custom_call.1} parent=1 // pred_check
      _
    $region31: #{tpu_custom_call.1} parent=1 // pred_check_branch
      %1704 = sbr.rel (0) target = $region33
    $region32: #{tpu_custom_call.1} parent=1 // pred_region
      %s1706 = ssub.s32 2048, 2048
      %1707 = vsyncadd [#allocation8], %s1706
      %s1708 = sshll.u32 [#allocation9], 4
      %s1709 = int_to_ptr.vmem [resolvable:$true] %s1708
      %1714 = dma.vmem_to_hbm [thread:$0]  %s1709, 2048, %s4, [#allocation8], 128, 128, 8
    $region33: #{tpu_custom_call.1} parent=1 // pred_fallthru
      _
    // Predicated region
    $region34: #{tpu_custom_call.1} parent=1 // pred_check
      _
    $region35: #{tpu_custom_call.1} parent=1 // pred_check_branch
      %1716 = sbr.rel (0) target = $region37
    $region36: #{tpu_custom_call.1} parent=1 // pred_region
      %1717 = dma.done [#allocation8], 2048
    $region37: #{tpu_custom_call.1} parent=1 // pred_fallthru
      _
    %1718 = vsyncpa [#allocation7], 1
    %1719 = vsyncpa [#allocation8], 1

</llo_original>
